<compile_context>
chip_gen: v6e
topology: v6e:2x2x1
jax: 0.10.0
libtpu: 0.0.40
codegen_flags: <defaults>
</compile_context>

<pallas_src>
import jax
import jax.numpy as jnp
from jax.experimental import pallas as pl
from jax.experimental.pallas import tpu as pltpu

F32 = jnp.float32
BF16 = jnp.bfloat16


# ---------------------------------------------------------------------------
# Fused kernel: conv1+ReLU+pool1, conv2+ReLU+pool2, fc1/fc2/fc3 for G images.
# ---------------------------------------------------------------------------

def lenet_kernel(x1_ref, t1_ref, b1_ref, t2_ref, b2_ref, de_ref, do_ref,
                 wf1_ref, bf1_ref, wf2_ref, bf2_ref, wf3_ref, bf3_ref,
                 out_ref):
    G = de_ref.shape[0] // 5          # images per grid step (static)
    R = x1_ref.shape[0]               # 16 * G
    Mfc = out_ref.shape[1]            # max(8, G): rows of the MLP / output tile

    # ---- conv1 (+ 2x2/2 max-pool folded into 4 column blocks of 128 lanes) ----
    # x1 rows = (image, pooled row hp), cols = (dy' in [0,6), input column j).
    h1 = jnp.dot(x1_ref[...], t1_ref[...], preferred_element_type=F32)       # [16G, 512]
    p1 = jnp.maximum(jnp.maximum(h1[:, 0:128],   h1[:, 128:256]),
                     jnp.maximum(h1[:, 256:384], h1[:, 384:512]))
    p1 = jnp.maximum(p1 + b1_ref[...], 0.0)                                  # [16G, 128]
    # p1 rows (g, i): i in [0,14) valid; rows 14/15 are finite garbage that is
    # never read for valid outputs.  Columns 84..127 are exactly zero.

    # ---- conv2 patch slab: 5 dy-shifted row slices, all lane-aligned ----------
    p1p = jnp.concatenate([p1, jnp.zeros((8, 128), F32)], axis=0)            # [16G+8, 128]
    xcat2 = jnp.concatenate([p1p[dy:dy + R, :] for dy in range(5)], axis=1)  # [16G, 640]

    # ---- conv2 (+ column-pair pool folded into 2 column blocks) ---------------
    h2 = jnp.dot(xcat2.astype(BF16), t2_ref[...], preferred_element_type=F32)  # [16G, 256]
    v2 = jnp.maximum(h2[:, 0:128], h2[:, 128:256]) + b2_ref[...]             # [16G, 128]
    v2b = v2.astype(BF16)                                                    # single hoisted cast

    # ---- row-pair pool: even/odd row selections; output rows are (u, image)-
    # major which is exactly the order the fc flatten concatenates below.
    p2 = jnp.maximum(jnp.dot(de_ref[...], v2b, preferred_element_type=F32),
                     jnp.dot(do_ref[...], v2b, preferred_element_type=F32))
    p2 = jnp.maximum(p2, 0.0)                                                # [5G, 128]

    # ---- flatten to [G, 640] (u-major 128-lane blocks); pad rows to Mfc -------
    xfc = jnp.concatenate([p2[u * G:(u + 1) * G, :] for u in range(5)], axis=1)
    if G < Mfc:
        xfc = jnp.concatenate([xfc, jnp.zeros((Mfc - G, 640), F32)], axis=0)
    xfc = xfc.astype(BF16)                                                   # [Mfc, 640]

    # ---- MLP (logits padded to 128 lanes -> unmasked dense store) -------------
    z = jnp.maximum(jnp.dot(xfc, wf1_ref[...], preferred_element_type=F32)
                    + bf1_ref[...], 0.0)
    z = jnp.maximum(jnp.dot(z.astype(BF16), wf2_ref[...], preferred_element_type=F32)
                    + bf2_ref[...], 0.0)
    out_ref[0] = (jnp.dot(z.astype(BF16), wf3_ref[...], preferred_element_type=F32)
                  + bf3_ref[...])


# ---------------------------------------------------------------------------
# Wrapper-side weight preprocessing (tiny, weights-only)
# ---------------------------------------------------------------------------

def _conv1_pool_matrix(w1):
    """T1[(dy', j), (py, px, v, c)] = w1[c, 0, dy'-py, j-2v-px] (0 where invalid).

    Rows padded 192->256; each (py, px) block padded 84->128 so the kernel's
    pooling slices are 128-lane aligned.  Shape [256, 512] bf16."""
    dyp = jnp.arange(6); py = jnp.arange(2); dy = jnp.arange(5)
    j = jnp.arange(32); v = jnp.arange(14); px = jnp.arange(2); dx = jnp.arange(5)
    ind_y = (dyp[:, None, None] == py[None, :, None] + dy[None, None, :]).astype(F32)
    ind_x = (j[:, None, None, None] ==
             2 * v[None, :, None, None] + px[None, None, :, None]
             + dx[None, None, None, :]).astype(F32)
    t = jnp.einsum('ypd,jvxe,cde->yjpxvc', ind_y, ind_x, w1[:, 0].astype(F32))
    t = t.reshape(192, 2, 2, 84)
    t = jnp.pad(t, ((0, 64), (0, 0), (0, 0), (0, 44)))
    return t.reshape(256, 512).astype(BF16)


def _conv2_pool_matrix(w2):
    """T2[(dy, v*6+ci), (px, w*16+co)] = w2[co, ci, dy, v-2w-px].  [640, 256] bf16."""
    v = jnp.arange(14); w_ = jnp.arange(5); px = jnp.arange(2); dx = jnp.arange(5)
    ind_x = (v[:, None, None, None] ==
             2 * w_[None, :, None, None] + px[None, None, :, None]
             + dx[None, None, None, :]).astype(F32)
    t = jnp.einsum('vwxe,oide->dvixwo', ind_x, w2.astype(F32))   # [5,14,6,2,5,16]
    t = t.reshape(5, 84, 2, 80)
    t = jnp.pad(t, ((0, 0), (0, 44), (0, 0), (0, 48)))
    return t.reshape(640, 256).astype(BF16)


def _row_pool_selectors(G):
    """De/Do[(u*G+g), (g*16 + 2u (+1))] = 1 -- pool2 rows + fc-flatten reorder."""
    u = jnp.arange(5); g = jnp.arange(G)
    cols = (g[None, :] * 16 + 2 * u[:, None]).reshape(-1)        # row q = u*G + g
    de = jax.nn.one_hot(cols, 16 * G, dtype=F32).astype(BF16)
    do = jax.nn.one_hot(cols + 1, 16 * G, dtype=F32).astype(BF16)
    return de, do


def _im2col_conv1(x_nchw, b_pad):
    """[B,1,32,32] -> [b_pad*16, 256] bf16; rows = pooled output row, cols = 6 dy rows."""
    x2 = x_nchw[:, 0].astype(F32)                                 # [B, 32, 32]
    b = x2.shape[0]
    if b_pad > b:
        x2 = jnp.pad(x2, ((0, b_pad - b), (0, 0), (0, 0)))
    ridx = 2 * jnp.arange(14)[:, None] + jnp.arange(6)[None, :]   # values in [0, 32)
    xg = x2[:, ridx, :]                                           # [b_pad, 14, 6, 32]
    xg = xg.reshape(b_pad, 14, 192)
    xg = jnp.pad(xg, ((0, 0), (0, 2), (0, 64)))                   # [b_pad, 16, 256]
    return xg.reshape(b_pad * 16, 256).astype(BF16)


def _prepare_operands(x_nchw, params, G, steps):
    (w1, b1) = params["conv1"]; (w2, b2) = params["conv2"]
    (wf1, bf1) = params["fc1"]; (wf2, bf2) = params["fc2"]; (wf3, bf3) = params["fc3"]

    xcat1 = _im2col_conv1(x_nchw, G * steps)

    t1 = _conv1_pool_matrix(w1)
    b1r = jnp.pad(jnp.tile(b1.astype(F32), 14), (0, 44)).reshape(1, 128)
    t2 = _conv2_pool_matrix(w2)
    b2r = jnp.pad(jnp.tile(b2.astype(F32), 5), (0, 48)).reshape(1, 128)
    de, do = _row_pool_selectors(G)

    # fc1 weight permuted to the kernel's (u, vx, c2) flatten order, padded to 128 lanes.
    wf1p = wf1.reshape(120, 16, 5, 5).transpose(2, 3, 1, 0).reshape(5, 80, 120)
    wf1p = jnp.pad(wf1p, ((0, 0), (0, 48), (0, 8))).reshape(640, 128).astype(BF16)
    bf1r = jnp.pad(bf1.astype(F32), (0, 8)).reshape(1, 128)
    wf2p = jnp.pad(wf2.T, ((0, 8), (0, 44))).astype(BF16)         # [128, 128]
    bf2r = jnp.pad(bf2.astype(F32), (0, 44)).reshape(1, 128)
    wf3p = jnp.pad(wf3.T, ((0, 44), (0, 118))).astype(BF16)       # [128, 128]
    bf3r = jnp.pad(bf3.astype(F32), (0, 118)).reshape(1, 128)

    return (xcat1, t1, b1r, t2, b2r, de, do,
            wf1p, bf1r, wf2p, bf2r, wf3p, bf3r)


def lenet_forward(x_nchw, params):
    B = x_nchw.shape[0]
    G = min(16, max(1, B // 2))       # images per grid step; >= 2 steps when B >= 2
    steps = -(-B // G)
    Mfc = max(8, G)

    ops = _prepare_operands(x_nchw, params, G, steps)

    in_specs = [pl.BlockSpec((16 * G, 256), lambda b: (b, 0))]            # per-step input slab
    in_specs += [pl.BlockSpec(a.shape, lambda b: (0, 0)) for a in ops[1:]]  # weights: whole arrays

    out = pl.pallas_call(
        lenet_kernel,
        out_shape=jax.ShapeDtypeStruct((steps, Mfc, 128), jnp.float32),
        grid_spec=pltpu.PrefetchScalarGridSpec(
            num_scalar_prefetch=0,
            grid=(steps,),
            in_specs=in_specs,
            out_specs=pl.BlockSpec((1, Mfc, 128), lambda b: (b, 0, 0)),
        ),
        compiler_params=pltpu.CompilerParams(
            dimension_semantics=("parallel",)),
    )(*ops)
    return out[:, :G, :10].reshape(steps * G, 10)[:B]


# ---------------------------------------------------------------------------
# Deterministic parameter init (PyTorch-style uniform(-1/sqrt(fan_in), +..))
# ---------------------------------------------------------------------------

def init_params(key):
    ks = jax.random.split(key, 10)

    def u(k, shape, fan_in):
        bound = 1.0 / jnp.sqrt(float(fan_in))
        return jax.random.uniform(k, shape, jnp.float32, -bound, bound)

    return {
        "conv1": (u(ks[0], (6, 1, 5, 5), 25), u(ks[1], (6,), 25)),
        "conv2": (u(ks[2], (16, 6, 5, 5), 150), u(ks[3], (16,), 150)),
        "fc1": (u(ks[4], (120, 400), 400), u(ks[5], (120,), 400)),
        "fc2": (u(ks[6], (84, 120), 120), u(ks[7], (84,), 120)),
        "fc3": (u(ks[8], (10, 84), 84), u(ks[9], (10,), 84)),
    }


# ---------------------------------------------------------------------------
# Pure-JAX reference (independent path) for a correctness check
# ---------------------------------------------------------------------------

def lenet_reference(x, params):
    def conv(y, w, b):
        y = jax.lax.conv_general_dilated(
            y, w, (1, 1), "VALID", dimension_numbers=("NCHW", "OIHW", "NCHW"))
        return y + b.reshape(1, -1, 1, 1)

    def pool(y):
        return jax.lax.reduce_window(
            y, -jnp.inf, jax.lax.max, (1, 1, 2, 2), (1, 1, 2, 2), "VALID")

    y = pool(jax.nn.relu(conv(x, *params["conv1"])))
    y = pool(jax.nn.relu(conv(y, *params["conv2"])))
    y = y.reshape(y.shape[0], -1)
    w1, b1 = params["fc1"]
    w2, b2 = params["fc2"]
    w3, b3 = params["fc3"]
    y = jax.nn.relu(y @ w1.T + b1)
    y = jax.nn.relu(y @ w2.T + b2)
    return y @ w3.T + b3


if __name__ == "__main__":
    key = jax.random.PRNGKey(0)
    kx, kp = jax.random.split(key)
    # LeNet's fc1 (16*5*5) implies 32x32 single-channel inputs; batch = 2.
    x = jax.random.normal(kx, (2, 1, 32, 32), jnp.float32)    # NCHW like PyTorch
    params = init_params(kp)

    out = jax.jit(lenet_forward)(x, params)
    out = jax.block_until_ready(out)

    ref = lenet_reference(x, params)
    assert out.shape == (2, 10), out.shape
    # Matmul operands are bf16 (MXU-native); f32 accumulation everywhere.
    assert jnp.allclose(out, ref, rtol=1e-2, atol=2e-2), float(jnp.max(jnp.abs(out - ref)))
    print("KERNEL_OK")
</pallas_src>

<mosaic_0001>
module attributes {stable_mosaic.version = 11 : i64} {
  func.func @lenet_kernel(%arg0: i32, %arg1: memref<16x256xbf16, #tpu.memory_space<vmem>>, %arg2: memref<256x512xbf16, #tpu.memory_space<vmem>>, %arg3: memref<1x128xf32, #tpu.memory_space<vmem>>, %arg4: memref<640x256xbf16, #tpu.memory_space<vmem>>, %arg5: memref<1x128xf32, #tpu.memory_space<vmem>>, %arg6: memref<5x16xbf16, #tpu.memory_space<vmem>>, %arg7: memref<5x16xbf16, #tpu.memory_space<vmem>>, %arg8: memref<640x128xbf16, #tpu.memory_space<vmem>>, %arg9: memref<1x128xf32, #tpu.memory_space<vmem>>, %arg10: memref<128x128xbf16, #tpu.memory_space<vmem>>, %arg11: memref<1x128xf32, #tpu.memory_space<vmem>>, %arg12: memref<128x128xbf16, #tpu.memory_space<vmem>>, %arg13: memref<1x128xf32, #tpu.memory_space<vmem>>, %arg14: memref<1x8x128xf32, #tpu.memory_space<vmem>>) attributes {dimension_semantics = [#tpu.dimension_semantics<parallel>], iteration_bounds = array<i64: 2>, scalar_prefetch = 0 : i64, scratch_operands = 0 : i64, tpu.core_type = #tpu.core_type<tc>, window_params = [{transform_indices = @transform_0, window_bounds = array<i64: 16, 256>}, {pipeline_mode = #tpu.pipeline_mode<synchronous>, transform_indices = @transform_1, window_bounds = array<i64: 256, 512>}, {pipeline_mode = #tpu.pipeline_mode<synchronous>, transform_indices = @transform_2, window_bounds = array<i64: 1, 128>}, {pipeline_mode = #tpu.pipeline_mode<synchronous>, transform_indices = @transform_3, window_bounds = array<i64: 640, 256>}, {pipeline_mode = #tpu.pipeline_mode<synchronous>, transform_indices = @transform_4, window_bounds = array<i64: 1, 128>}, {pipeline_mode = #tpu.pipeline_mode<synchronous>, transform_indices = @transform_5, window_bounds = array<i64: 5, 16>}, {pipeline_mode = #tpu.pipeline_mode<synchronous>, transform_indices = @transform_6, window_bounds = array<i64: 5, 16>}, {pipeline_mode = #tpu.pipeline_mode<synchronous>, transform_indices = @transform_7, window_bounds = array<i64: 640, 128>}, {pipeline_mode = #tpu.pipeline_mode<synchronous>, transform_indices = @transform_8, window_bounds = array<i64: 1, 128>}, {pipeline_mode = #tpu.pipeline_mode<synchronous>, transform_indices = @transform_9, window_bounds = array<i64: 128, 128>}, {pipeline_mode = #tpu.pipeline_mode<synchronous>, transform_indices = @transform_10, window_bounds = array<i64: 1, 128>}, {pipeline_mode = #tpu.pipeline_mode<synchronous>, transform_indices = @transform_11, window_bounds = array<i64: 128, 128>}, {pipeline_mode = #tpu.pipeline_mode<synchronous>, transform_indices = @transform_12, window_bounds = array<i64: 1, 128>}, {transform_indices = @transform_13, window_bounds = array<i64: 1, 8, 128>}]} {
    %c0 = arith.constant 0 : index
    %c0_0 = arith.constant 0 : index
    %0 = vector.load %arg1[%c0, %c0_0] : memref<16x256xbf16, #tpu.memory_space<vmem>>, vector<16x256xbf16>
    %c0_1 = arith.constant 0 : index
    %c0_2 = arith.constant 0 : index
    %1 = vector.load %arg2[%c0_1, %c0_2] : memref<256x512xbf16, #tpu.memory_space<vmem>>, vector<256x512xbf16>
    %cst = arith.constant dense<0.000000e+00> : vector<16x512xf32>
    %2 = tpu.matmul %0, %1, %cst {dimension_numbers = #tpu.dot_dimension_numbers<[1], [0], [0], [1], [0, 0, 1, 1], [], []>} : vector<16x256xbf16>, vector<256x512xbf16>, vector<16x512xf32> -> vector<16x512xf32>
    %3 = vector.extract_strided_slice %2 {offsets = [0, 0], sizes = [16, 128], strides = [1, 1]} : vector<16x512xf32> to vector<16x128xf32>
    %4 = vector.extract_strided_slice %2 {offsets = [0, 128], sizes = [16, 128], strides = [1, 1]} : vector<16x512xf32> to vector<16x128xf32>
    %5 = arith.maximumf %3, %4 : vector<16x128xf32>
    %6 = vector.extract_strided_slice %2 {offsets = [0, 256], sizes = [16, 128], strides = [1, 1]} : vector<16x512xf32> to vector<16x128xf32>
    %7 = vector.extract_strided_slice %2 {offsets = [0, 384], sizes = [16, 128], strides = [1, 1]} : vector<16x512xf32> to vector<16x128xf32>
    %8 = arith.maximumf %6, %7 : vector<16x128xf32>
    %9 = arith.maximumf %5, %8 : vector<16x128xf32>
    %c0_3 = arith.constant 0 : index
    %c0_4 = arith.constant 0 : index
    %10 = vector.load %arg3[%c0_3, %c0_4] : memref<1x128xf32, #tpu.memory_space<vmem>>, vector<1x128xf32>
    %11 = vector.broadcast %10 : vector<1x128xf32> to vector<16x128xf32>
    %12 = arith.addf %9, %11 : vector<16x128xf32>
    %cst_5 = arith.constant 0.000000e+00 : f32
    %13 = vector.broadcast %cst_5 : f32 to vector<16x128xf32>
    %14 = arith.maximumf %12, %13 : vector<16x128xf32>
    %cst_6 = arith.constant 0.000000e+00 : f32
    %15 = vector.broadcast %cst_6 : f32 to vector<8x128xf32>
    %16 = tpu.concatenate %14, %15 in 0 : vector<16x128xf32>, vector<8x128xf32> -> vector<24x128xf32>
    %17 = vector.extract_strided_slice %16 {offsets = [0, 0], sizes = [16, 128], strides = [1, 1]} : vector<24x128xf32> to vector<16x128xf32>
    %18 = vector.extract_strided_slice %16 {offsets = [1, 0], sizes = [16, 128], strides = [1, 1]} : vector<24x128xf32> to vector<16x128xf32>
    %19 = vector.extract_strided_slice %16 {offsets = [2, 0], sizes = [16, 128], strides = [1, 1]} : vector<24x128xf32> to vector<16x128xf32>
    %20 = vector.extract_strided_slice %16 {offsets = [3, 0], sizes = [16, 128], strides = [1, 1]} : vector<24x128xf32> to vector<16x128xf32>
    %21 = vector.extract_strided_slice %16 {offsets = [4, 0], sizes = [16, 128], strides = [1, 1]} : vector<24x128xf32> to vector<16x128xf32>
    %22 = tpu.concatenate %17, %18, %19, %20, %21 in 1 : vector<16x128xf32>, vector<16x128xf32>, vector<16x128xf32>, vector<16x128xf32>, vector<16x128xf32> -> vector<16x640xf32>
    %23 = arith.truncf %22 : vector<16x640xf32> to vector<16x640xbf16>
    %c0_7 = arith.constant 0 : index
    %c0_8 = arith.constant 0 : index
    %24 = vector.load %arg4[%c0_7, %c0_8] : memref<640x256xbf16, #tpu.memory_space<vmem>>, vector<640x256xbf16>
    %cst_9 = arith.constant dense<0.000000e+00> : vector<16x256xf32>
    %25 = tpu.matmul %23, %24, %cst_9 {dimension_numbers = #tpu.dot_dimension_numbers<[1], [0], [0], [1], [0, 0, 1, 1], [], []>} : vector<16x640xbf16>, vector<640x256xbf16>, vector<16x256xf32> -> vector<16x256xf32>
    %26 = vector.extract_strided_slice %25 {offsets = [0, 0], sizes = [16, 128], strides = [1, 1]} : vector<16x256xf32> to vector<16x128xf32>
    %27 = vector.extract_strided_slice %25 {offsets = [0, 128], sizes = [16, 128], strides = [1, 1]} : vector<16x256xf32> to vector<16x128xf32>
    %28 = arith.maximumf %26, %27 : vector<16x128xf32>
    %c0_10 = arith.constant 0 : index
    %c0_11 = arith.constant 0 : index
    %29 = vector.load %arg5[%c0_10, %c0_11] : memref<1x128xf32, #tpu.memory_space<vmem>>, vector<1x128xf32>
    %30 = vector.broadcast %29 : vector<1x128xf32> to vector<16x128xf32>
    %31 = arith.addf %28, %30 : vector<16x128xf32>
    %32 = arith.truncf %31 : vector<16x128xf32> to vector<16x128xbf16>
    %c0_12 = arith.constant 0 : index
    %c0_13 = arith.constant 0 : index
    %33 = vector.load %arg6[%c0_12, %c0_13] : memref<5x16xbf16, #tpu.memory_space<vmem>>, vector<5x16xbf16>
    %cst_14 = arith.constant dense<0.000000e+00> : vector<5x128xf32>
    %34 = tpu.matmul %33, %32, %cst_14 {dimension_numbers = #tpu.dot_dimension_numbers<[1], [0], [0], [1], [0, 0, 1, 1], [], []>} : vector<5x16xbf16>, vector<16x128xbf16>, vector<5x128xf32> -> vector<5x128xf32>
    %c0_15 = arith.constant 0 : index
    %c0_16 = arith.constant 0 : index
    %35 = vector.load %arg7[%c0_15, %c0_16] : memref<5x16xbf16, #tpu.memory_space<vmem>>, vector<5x16xbf16>
    %cst_17 = arith.constant dense<0.000000e+00> : vector<5x128xf32>
    %36 = tpu.matmul %35, %32, %cst_17 {dimension_numbers = #tpu.dot_dimension_numbers<[1], [0], [0], [1], [0, 0, 1, 1], [], []>} : vector<5x16xbf16>, vector<16x128xbf16>, vector<5x128xf32> -> vector<5x128xf32>
    %37 = arith.maximumf %34, %36 : vector<5x128xf32>
    %cst_18 = arith.constant 0.000000e+00 : f32
    %38 = vector.broadcast %cst_18 : f32 to vector<5x128xf32>
    %39 = arith.maximumf %37, %38 : vector<5x128xf32>
    %40 = vector.extract_strided_slice %39 {offsets = [0, 0], sizes = [1, 128], strides = [1, 1]} : vector<5x128xf32> to vector<1x128xf32>
    %41 = vector.extract_strided_slice %39 {offsets = [1, 0], sizes = [1, 128], strides = [1, 1]} : vector<5x128xf32> to vector<1x128xf32>
    %42 = vector.extract_strided_slice %39 {offsets = [2, 0], sizes = [1, 128], strides = [1, 1]} : vector<5x128xf32> to vector<1x128xf32>
    %43 = vector.extract_strided_slice %39 {offsets = [3, 0], sizes = [1, 128], strides = [1, 1]} : vector<5x128xf32> to vector<1x128xf32>
    %44 = vector.extract_strided_slice %39 {offsets = [4, 0], sizes = [1, 128], strides = [1, 1]} : vector<5x128xf32> to vector<1x128xf32>
    %45 = tpu.concatenate %40, %41, %42, %43, %44 in 1 : vector<1x128xf32>, vector<1x128xf32>, vector<1x128xf32>, vector<1x128xf32>, vector<1x128xf32> -> vector<1x640xf32>
    %cst_19 = arith.constant 0.000000e+00 : f32
    %46 = vector.broadcast %cst_19 : f32 to vector<7x640xf32>
    %47 = tpu.concatenate %45, %46 in 0 : vector<1x640xf32>, vector<7x640xf32> -> vector<8x640xf32>
    %48 = arith.truncf %47 : vector<8x640xf32> to vector<8x640xbf16>
    %c0_20 = arith.constant 0 : index
    %c0_21 = arith.constant 0 : index
    %49 = vector.load %arg8[%c0_20, %c0_21] : memref<640x128xbf16, #tpu.memory_space<vmem>>, vector<640x128xbf16>
    %cst_22 = arith.constant dense<0.000000e+00> : vector<8x128xf32>
    %50 = tpu.matmul %48, %49, %cst_22 {dimension_numbers = #tpu.dot_dimension_numbers<[1], [0], [0], [1], [0, 0, 1, 1], [], []>} : vector<8x640xbf16>, vector<640x128xbf16>, vector<8x128xf32> -> vector<8x128xf32>
    %c0_23 = arith.constant 0 : index
    %c0_24 = arith.constant 0 : index
    %51 = vector.load %arg9[%c0_23, %c0_24] : memref<1x128xf32, #tpu.memory_space<vmem>>, vector<1x128xf32>
    %52 = vector.broadcast %51 : vector<1x128xf32> to vector<8x128xf32>
    %53 = arith.addf %50, %52 : vector<8x128xf32>
    %cst_25 = arith.constant 0.000000e+00 : f32
    %54 = vector.broadcast %cst_25 : f32 to vector<8x128xf32>
    %55 = arith.maximumf %53, %54 : vector<8x128xf32>
    %56 = arith.truncf %55 : vector<8x128xf32> to vector<8x128xbf16>
    %c0_26 = arith.constant 0 : index
    %c0_27 = arith.constant 0 : index
    %57 = vector.load %arg10[%c0_26, %c0_27] : memref<128x128xbf16, #tpu.memory_space<vmem>>, vector<128x128xbf16>
    %cst_28 = arith.constant dense<0.000000e+00> : vector<8x128xf32>
    %58 = tpu.matmul %56, %57, %cst_28 {dimension_numbers = #tpu.dot_dimension_numbers<[1], [0], [0], [1], [0, 0, 1, 1], [], []>} : vector<8x128xbf16>, vector<128x128xbf16>, vector<8x128xf32> -> vector<8x128xf32>
    %c0_29 = arith.constant 0 : index
    %c0_30 = arith.constant 0 : index
    %59 = vector.load %arg11[%c0_29, %c0_30] : memref<1x128xf32, #tpu.memory_space<vmem>>, vector<1x128xf32>
    %60 = vector.broadcast %59 : vector<1x128xf32> to vector<8x128xf32>
    %61 = arith.addf %58, %60 : vector<8x128xf32>
    %cst_31 = arith.constant 0.000000e+00 : f32
    %62 = vector.broadcast %cst_31 : f32 to vector<8x128xf32>
    %63 = arith.maximumf %61, %62 : vector<8x128xf32>
    %64 = arith.truncf %63 : vector<8x128xf32> to vector<8x128xbf16>
    %c0_32 = arith.constant 0 : index
    %c0_33 = arith.constant 0 : index
    %65 = vector.load %arg12[%c0_32, %c0_33] : memref<128x128xbf16, #tpu.memory_space<vmem>>, vector<128x128xbf16>
    %cst_34 = arith.constant dense<0.000000e+00> : vector<8x128xf32>
    %66 = tpu.matmul %64, %65, %cst_34 {dimension_numbers = #tpu.dot_dimension_numbers<[1], [0], [0], [1], [0, 0, 1, 1], [], []>} : vector<8x128xbf16>, vector<128x128xbf16>, vector<8x128xf32> -> vector<8x128xf32>
    %c0_35 = arith.constant 0 : index
    %c0_36 = arith.constant 0 : index
    %67 = vector.load %arg13[%c0_35, %c0_36] : memref<1x128xf32, #tpu.memory_space<vmem>>, vector<1x128xf32>
    %68 = vector.broadcast %67 : vector<1x128xf32> to vector<8x128xf32>
    %69 = arith.addf %66, %68 : vector<8x128xf32>
    %c0_37 = arith.constant 0 : index
    %c0_38 = arith.constant 0 : index
    %c0_39 = arith.constant 0 : index
    %70 = vector.load %arg14[%c0_37, %c0_38, %c0_39] : memref<1x8x128xf32, #tpu.memory_space<vmem>>, vector<1x8x128xf32>
    %71 = vector.shape_cast %70 : vector<1x8x128xf32> to vector<8x128xf32>
    %72 = vector.shape_cast %69 : vector<8x128xf32> to vector<1x8x128xf32>
    tpu.vector_store %arg14[%c0_37, %c0_38, %c0_39], %72 {strides = array<i32>} : memref<1x8x128xf32, #tpu.memory_space<vmem>>, vector<1x8x128xf32>,
    return
  }
  func.func @transform_0(%arg0: i32) -> (i32, i32) {
    %c0_i32 = arith.constant 0 : i32
    %c0_i32_0 = arith.constant 0 : i32
    return %arg0, %c0_i32 : i32, i32
  }
  func.func @transform_1(%arg0: i32) -> (i32, i32) {
    %c0_i32 = arith.constant 0 : i32
    %c0_i32_0 = arith.constant 0 : i32
    %c0_i32_1 = arith.constant 0 : i32
    return %c0_i32, %c0_i32_0 : i32, i32
  }
  func.func @transform_2(%arg0: i32) -> (i32, i32) {
    %c0_i32 = arith.constant 0 : i32
    %c0_i32_0 = arith.constant 0 : i32
    %c0_i32_1 = arith.constant 0 : i32
    return %c0_i32, %c0_i32_0 : i32, i32
  }
  func.func @transform_3(%arg0: i32) -> (i32, i32) {
    %c0_i32 = arith.constant 0 : i32
    %c0_i32_0 = arith.constant 0 : i32
    %c0_i32_1 = arith.constant 0 : i32
    return %c0_i32, %c0_i32_0 : i32, i32
  }
  func.func @transform_4(%arg0: i32) -> (i32, i32) {
    %c0_i32 = arith.constant 0 : i32
    %c0_i32_0 = arith.constant 0 : i32
    %c0_i32_1 = arith.constant 0 : i32
    return %c0_i32, %c0_i32_0 : i32, i32
  }
  func.func @transform_5(%arg0: i32) -> (i32, i32) {
    %c0_i32 = arith.constant 0 : i32
    %c0_i32_0 = arith.constant 0 : i32
    %c0_i32_1 = arith.constant 0 : i32
    return %c0_i32, %c0_i32_0 : i32, i32
  }
  func.func @transform_6(%arg0: i32) -> (i32, i32) {
    %c0_i32 = arith.constant 0 : i32
    %c0_i32_0 = arith.constant 0 : i32
    %c0_i32_1 = arith.constant 0 : i32
    return %c0_i32, %c0_i32_0 : i32, i32
  }
  func.func @transform_7(%arg0: i32) -> (i32, i32) {
    %c0_i32 = arith.constant 0 : i32
    %c0_i32_0 = arith.constant 0 : i32
    %c0_i32_1 = arith.constant 0 : i32
    return %c0_i32, %c0_i32_0 : i32, i32
  }
  func.func @transform_8(%arg0: i32) -> (i32, i32) {
    %c0_i32 = arith.constant 0 : i32
    %c0_i32_0 = arith.constant 0 : i32
    %c0_i32_1 = arith.constant 0 : i32
    return %c0_i32, %c0_i32_0 : i32, i32
  }
  func.func @transform_9(%arg0: i32) -> (i32, i32) {
    %c0_i32 = arith.constant 0 : i32
    %c0_i32_0 = arith.constant 0 : i32
    %c0_i32_1 = arith.constant 0 : i32
    return %c0_i32, %c0_i32_0 : i32, i32
  }
  func.func @transform_10(%arg0: i32) -> (i32, i32) {
    %c0_i32 = arith.constant 0 : i32
    %c0_i32_0 = arith.constant 0 : i32
    %c0_i32_1 = arith.constant 0 : i32
    return %c0_i32, %c0_i32_0 : i32, i32
  }
  func.func @transform_11(%arg0: i32) -> (i32, i32) {
    %c0_i32 = arith.constant 0 : i32
    %c0_i32_0 = arith.constant 0 : i32
    %c0_i32_1 = arith.constant 0 : i32
    return %c0_i32, %c0_i32_0 : i32, i32
  }
  func.func @transform_12(%arg0: i32) -> (i32, i32) {
    %c0_i32 = arith.constant 0 : i32
    %c0_i32_0 = arith.constant 0 : i32
    %c0_i32_1 = arith.constant 0 : i32
    return %c0_i32, %c0_i32_0 : i32, i32
  }
  func.func @transform_13(%arg0: i32) -> (i32, i32, i32) {
    %c0_i32 = arith.constant 0 : i32
    %c0_i32_0 = arith.constant 0 : i32
    %c0_i32_1 = arith.constant 0 : i32
    return %arg0, %c0_i32, %c0_i32_0 : i32, i32, i32
  }
}

</mosaic_0001>

<llo_original>
// kernel: tile.18
$region0: #{tile.18}
  #allocation0 [shape = 's32[1]{0}', space=sflag, size = 0x4, scoped, tag = 'scoped memory for tile.18']
  %s0 = inlined_call_operand.vmem [shape: f32[16], index: 0, kind: input, shape index: {}]
  %s1 = inlined_call_operand.vmem [shape: f32[5,16], index: 1, kind: output, shape index: {}]
  // Predicated region
  $region2: #{tile.18} parent=0 // pred_check
    _
  $region3: #{tile.18} parent=0 // pred_check_branch
    %3 = sbr.rel (0) target = $region5
  $region4: #{tile.18} parent=0 // pred_region
    _
  $region5: #{tile.18} parent=0 // pred_fallthru
    _
  %v4 = vld [vmem:[%s0] ss:$0 sm:$0xff]
  %5 = vst [vmem:[%s1] sm:$0xff] %v4

// kernel: tile.19
$region0: #{tile.19}
  %s0 = inlined_call_operand.vmem [shape: f32[5,16], index: 0, kind: input, shape index: {}]
  %s1 = inlined_call_operand.vmem [shape: f32[80], index: 1, kind: output, shape index: {}]
  $region1: #{tile.19} parent=0
    #allocation0 [shape = 'u8[4096]{0}', space=vmem, size = 0x1000, scoped, tag = 'scoped mem for output reshape']
    %v2 = vld [vmem:[%s0] sm:$0x1]
    %vm3 = vcmask 130048
    %4 = vst.msk [vmem:[#allocation0] sm:$0x1] %vm3, %v2
    %s5 = scalar_lea.vmem %s0, 4
    %v6 = vld [vmem:[%s5] sm:$0x1]
    %7 = vrot.lane.b32.xlu0 %v6, 64
    %v8 = vpop.permute.xlu0 %7
    %vm9 = vcmask 654848
    %10 = vst.msk [vmem:[#allocation0] sm:$0x1] %vm9, %v8
    %s11 = scalar_lea.vmem %s0, 3
    %v12 = vld [vmem:[%s11] sm:$0x1]
    %13 = vrot.lane.b32.xlu0 %v12, 48
    %v14 = vpop.permute.xlu0 %13
    %vm15 = vcmask 523648
    %16 = vst.msk [vmem:[#allocation0] sm:$0x1] %vm15, %v14
    %s17 = scalar_lea.vmem %s0, 2
    %v18 = vld [vmem:[%s17] sm:$0x1]
    %19 = vrot.lane.b32.xlu0 %v18, 32
    %v20 = vpop.permute.xlu0 %19
    %vm21 = vcmask 392448
    %22 = vst.msk [vmem:[#allocation0] sm:$0x1] %vm21, %v20
    %s23 = scalar_lea.vmem %s0, 1
    %v24 = vld [vmem:[%s23] sm:$0x1]
    %25 = vrot.lane.b32.xlu0 %v24, 16
    %v26 = vpop.permute.xlu0 %25
    %vm27 = vcmask 261248
    %28 = vst.msk [vmem:[#allocation0] sm:$0x1] %vm27, %v26
    %s30 = sshll.u32 1, 1
    %s31 = ssub.s32 %s30, 1
    %v33 = vld [vmem:[#allocation0] sm:%s31]
    %s34 = sshll.u32 1, 1
    %s35 = ssub.s32 %s34, 1
    %36 = vst [vmem:[%s1] sm:%s35] %v33

// kernel: tile.13
$region0: #{tile.13}
  #allocation0 [shape = 's32[1]{0}', space=sflag, size = 0x4, scoped, tag = 'scoped memory for tile.13']
  %s0 = inlined_call_operand.vmem [shape: f32[6], index: 0, kind: input, shape index: {}]
  %s1 = inlined_call_operand.vmem [shape: f32[14,6], index: 1, kind: output, shape index: {}]
  // Predicated region
  $region2: #{tile.13} parent=0 // pred_check
    _
  $region3: #{tile.13} parent=0 // pred_check_branch
    %3 = sbr.rel (0) target = $region5
  $region4: #{tile.13} parent=0 // pred_region
    _
  $region5: #{tile.13} parent=0 // pred_fallthru
    _
  %v4 = vld [vmem:[%s0] ss:$0 sm:$0xff]
  %5 = vst [vmem:[%s1] sm:$0xff] %v4
  %s6 = scalar_lea.vmem %s1, 8
  %7 = vst [vmem:[%s6] sm:$0xff] %v4

// kernel: tile.14
$region0: #{tile.14}
  %s0 = inlined_call_operand.vmem [shape: f32[14,6], index: 0, kind: input, shape index: {}]
  %s1 = inlined_call_operand.vmem [shape: f32[84], index: 1, kind: output, shape index: {}]
  $region1: #{tile.14} parent=0
    #allocation0 [shape = 'u8[4096]{0}', space=vmem, size = 0x1000, scoped, tag = 'scoped mem for output reshape']
    %v2 = vld [vmem:[%s0] sm:$0x1]
    %vm3 = vcmask 48128
    %4 = vst.msk [vmem:[#allocation0] sm:$0x1] %vm3, %v2
    %s5 = scalar_lea.vmem %s0, 13
    %v6 = vld [vmem:[%s5] sm:$0x1]
    %7 = vrot.lane.b32.xlu0 %v6, 78
    %v8 = vpop.permute.xlu0 %7
    %vm9 = vcmask 687728
    %10 = vst.msk [vmem:[#allocation0] sm:$0x1] %vm9, %v8
    %s11 = scalar_lea.vmem %s0, 12
    %v12 = vld [vmem:[%s11] sm:$0x1]
    %13 = vrot.lane.b32.xlu0 %v12, 72
    %v14 = vpop.permute.xlu0 %13
    %vm15 = vcmask 638528
    %16 = vst.msk [vmem:[#allocation0] sm:$0x1] %vm15, %v14
    %s17 = scalar_lea.vmem %s0, 11
    %v18 = vld [vmem:[%s17] sm:$0x1]
    %19 = vrot.lane.b32.xlu0 %v18, 66
    %v20 = vpop.permute.xlu0 %19
    %vm21 = vcmask 589328
    %22 = vst.msk [vmem:[#allocation0] sm:$0x1] %vm21, %v20
    %s23 = scalar_lea.vmem %s0, 10
    %v24 = vld [vmem:[%s23] sm:$0x1]
    %25 = vrot.lane.b32.xlu0 %v24, 60
    %v26 = vpop.permute.xlu0 %25
    %vm27 = vcmask 540128
    %28 = vst.msk [vmem:[#allocation0] sm:$0x1] %vm27, %v26
    %s29 = scalar_lea.vmem %s0, 9
    %v30 = vld [vmem:[%s29] sm:$0x1]
    %31 = vrot.lane.b32.xlu0 %v30, 54
    %v32 = vpop.permute.xlu0 %31
    %vm33 = vcmask 490928
    %34 = vst.msk [vmem:[#allocation0] sm:$0x1] %vm33, %v32
    %s35 = scalar_lea.vmem %s0, 8
    %v36 = vld [vmem:[%s35] sm:$0x1]
    %37 = vrot.lane.b32.xlu0 %v36, 48
    %v38 = vpop.permute.xlu0 %37
    %vm39 = vcmask 441728
    %40 = vst.msk [vmem:[#allocation0] sm:$0x1] %vm39, %v38
    %s41 = scalar_lea.vmem %s0, 7
    %v42 = vld [vmem:[%s41] sm:$0x1]
    %43 = vrot.lane.b32.xlu0 %v42, 42
    %v44 = vpop.permute.xlu0 %43
    %vm45 = vcmask 392528
    %46 = vst.msk [vmem:[#allocation0] sm:$0x1] %vm45, %v44
    %s47 = scalar_lea.vmem %s0, 6
    %v48 = vld [vmem:[%s47] sm:$0x1]
    %49 = vrot.lane.b32.xlu0 %v48, 36
    %v50 = vpop.permute.xlu0 %49
    %vm51 = vcmask 343328
    %52 = vst.msk [vmem:[#allocation0] sm:$0x1] %vm51, %v50
    %s53 = scalar_lea.vmem %s0, 5
    %v54 = vld [vmem:[%s53] sm:$0x1]
    %55 = vrot.lane.b32.xlu0 %v54, 30
    %v56 = vpop.permute.xlu0 %55
    %vm57 = vcmask 294128
    %58 = vst.msk [vmem:[#allocation0] sm:$0x1] %vm57, %v56
    %s59 = scalar_lea.vmem %s0, 4
    %v60 = vld [vmem:[%s59] sm:$0x1]
    %61 = vrot.lane.b32.xlu0 %v60, 24
    %v62 = vpop.permute.xlu0 %61
    %vm63 = vcmask 244928
    %64 = vst.msk [vmem:[#allocation0] sm:$0x1] %vm63, %v62
    %s65 = scalar_lea.vmem %s0, 3
    %v66 = vld [vmem:[%s65] sm:$0x1]
    %67 = vrot.lane.b32.xlu0 %v66, 18
    %v68 = vpop.permute.xlu0 %67
    %vm69 = vcmask 195728
    %70 = vst.msk [vmem:[#allocation0] sm:$0x1] %vm69, %v68
    %s71 = scalar_lea.vmem %s0, 2
    %v72 = vld [vmem:[%s71] sm:$0x1]
    %73 = vrot.lane.b32.xlu0 %v72, 12
    %v74 = vpop.permute.xlu0 %73
    %vm75 = vcmask 146528
    %76 = vst.msk [vmem:[#allocation0] sm:$0x1] %vm75, %v74
    %s77 = scalar_lea.vmem %s0, 1
    %v78 = vld [vmem:[%s77] sm:$0x1]
    %79 = vrot.lane.b32.xlu0 %v78, 6
    %v80 = vpop.permute.xlu0 %79
    %vm81 = vcmask 97328
    %82 = vst.msk [vmem:[#allocation0] sm:$0x1] %vm81, %v80
    %s84 = sshll.u32 1, 1
    %s85 = ssub.s32 %s84, 1
    %v87 = vld [vmem:[#allocation0] sm:%s85]
    %s88 = sshll.u32 1, 1
    %s89 = ssub.s32 %s88, 1
    %90 = vst [vmem:[%s1] sm:%s89] %v87

// kernel: lenet_forward.1
$region0: #{lenet_forward.1}
  #allocation0 [shape = 'u32[]', space=smem, size = 0x4, offset = 0x4, fixed_abs, tag = 'smem constant byte address 0x4 - core index']
  #allocation1 [shape = 'u32[144,128]{1,0:T(1,128)}', space=vmem, size = 0x12000, scoped, tag = 'internal scratch']
  %s0 = inlined_call_operand.vmem [shape: bf16[32,256], index: 0, kind: input, shape index: {}]
  %s1 = inlined_call_operand.vmem [shape: bf16[256,512], index: 1, kind: input, shape index: {}]
  %s2 = inlined_call_operand.vmem [shape: f32[1,128], index: 2, kind: input, shape index: {}]
  %s3 = inlined_call_operand.vmem [shape: bf16[640,256], index: 3, kind: input, shape index: {}]
  %s4 = inlined_call_operand.vmem [shape: f32[1,128], index: 4, kind: input, shape index: {}]
  %s5 = inlined_call_operand.vmem [shape: bf16[5,16], index: 5, kind: input, shape index: {}]
  %s6 = inlined_call_operand.vmem [shape: bf16[5,16], index: 6, kind: input, shape index: {}]
  %s7 = inlined_call_operand.vmem [shape: bf16[640,128], index: 7, kind: input, shape index: {}]
  %s8 = inlined_call_operand.vmem [shape: f32[1,128], index: 8, kind: input, shape index: {}]
  %s9 = inlined_call_operand.vmem [shape: bf16[128,128], index: 9, kind: input, shape index: {}]
  %s10 = inlined_call_operand.vmem [shape: f32[1,128], index: 10, kind: input, shape index: {}]
  %s11 = inlined_call_operand.vmem [shape: bf16[128,128], index: 11, kind: input, shape index: {}]
  %s12 = inlined_call_operand.vmem [shape: f32[1,128], index: 12, kind: input, shape index: {}]
  %s13 = inlined_call_operand.vmem [shape: f32[2,8,128], index: 13, kind: output, shape index: {}]
  %s14 = sld [smem:[#allocation0]]
  $region85: #{lenet_forward.1} parent=0
    _
  %s16 = ssub.s32 1, %s14
  %s17 = scalar_select 0, %s16, %s14
  loop: start=0, step=1, limit=4
  $region2: #{lenet_forward.1} parent=0 // loop_pre_header
    _
  $region3: #{lenet_forward.1} parent=0 // loop_header
    %s19 = sphi 0, %s23
    %p20 = scmp.ge.s32.totalorder %s19, 4
    %s29 = sphi 0, %s31
    %s32 = sphi 0, %s29
    %s33 = sphi 0, %s32
    %s49 = sphi 0, %s33
    %s53 = sphi 0, %s53
    %s55 = sphi 0, %s53
    %s56 = sphi 0, %s55
    %s70 = sphi 0, %s56
    %s74 = sphi 0, %s74
    %s76 = sphi 0, %s74
    %s77 = sphi 0, %s76
    %s91 = sphi 0, %s77
    %s95 = sphi 0, %s95
    %s97 = sphi 0, %s95
    %s98 = sphi 0, %s97
    %s112 = sphi 0, %s98
    %s116 = sphi 0, %s116
    %s118 = sphi 0, %s116
    %s119 = sphi 0, %s118
    %s133 = sphi 0, %s119
    %s137 = sphi 0, %s137
    %s139 = sphi 0, %s137
    %s140 = sphi 0, %s139
    %s154 = sphi 0, %s140
    %s158 = sphi 0, %s158
    %s160 = sphi 0, %s158
    %s161 = sphi 0, %s160
    %s175 = sphi 0, %s161
    %s179 = sphi 0, %s179
    %s181 = sphi 0, %s179
    %s182 = sphi 0, %s181
    %s196 = sphi 0, %s182
    %s200 = sphi 0, %s200
    %s202 = sphi 0, %s200
    %s203 = sphi 0, %s202
    %s217 = sphi 0, %s203
    %s221 = sphi 0, %s221
    %s223 = sphi 0, %s221
    %s224 = sphi 0, %s223
    %s238 = sphi 0, %s224
    %s242 = sphi 0, %s242
    %s244 = sphi 0, %s242
    %s245 = sphi 0, %s244
    %s259 = sphi 0, %s245
    %s263 = sphi 0, %s263
    %s265 = sphi 0, %s263
    %s266 = sphi 0, %s265
    %s280 = sphi 0, %s266
    %s284 = sphi 0, %s284
    %s286 = sphi 0, %s284
    %s287 = sphi 0, %s286
    %s301 = sphi 0, %s287
    %s307 = sphi 0, %s309
    %s310 = sphi 0, %s307
    %s311 = sphi 0, %s310
    %s327 = sphi 0, %s311
  $region4: #{lenet_forward.1} parent=0 // loop_header_branch
    %22 = sbr.rel (%p20) target = $region8
  $region5: #{lenet_forward.1} parent=0 // loop_body
    %s24 = ssub.s32 %s19, 1
    %s25 = ssub.s32 %s19, 2
    %s26 = sadd.s32 %s19, 1
    %s27 = ssub.s32 %s19, %s26
    %p28 = scmp.eq.s32.totalorder %s27, 0
    %s30 = sadd.s32 %s29, 1
    %s31 = scalar_select %p28, %s29, %s30
    %p34 = pneg %p28
    %p35 = scmp.eq.s32.totalorder %s19, 1
    %p36 = por %p34, %p35
    %p37 = scmp.ne.s32.totalorder %s29, %s32
    %p38 = scmp.eq.s32.totalorder %s19, 0
    %p39 = por %p37, %p38
    %p40 = scmp.ne.s32.totalorder %s29, %s32
    %p41 = scmp.eq.s32.totalorder %s24, 1
    %p42 = por %p40, %p41
    %p43 = scmp.ne.s32.totalorder %s32, %s33
    %p44 = scmp.eq.s32.totalorder %s24, 0
    %p45 = por %p43, %p44
    %p46 = scmp.ne.s32.totalorder %s32, %s33
    %p47 = scmp.eq.s32.totalorder %s25, 1
    %p48 = por %p46, %p47
    %p50 = scmp.ne.s32.totalorder %s33, %s49
    %p51 = scmp.eq.s32.totalorder %s25, 0
    %p52 = por %p50, %p51
    %s54 = sadd.s32 %s53, 1
    %p57 = scmp.eq.s32.totalorder %s19, 1
    %p58 = scmp.ne.s32.totalorder %s53, %s55
    %p59 = scmp.eq.s32.totalorder %s19, 0
    %p60 = por %p58, %p59
    %p61 = scmp.ne.s32.totalorder %s53, %s55
    %p62 = scmp.eq.s32.totalorder %s24, 1
    %p63 = por %p61, %p62
    %p64 = scmp.ne.s32.totalorder %s55, %s56
    %p65 = scmp.eq.s32.totalorder %s24, 0
    %p66 = por %p64, %p65
    %p67 = scmp.ne.s32.totalorder %s55, %s56
    %p68 = scmp.eq.s32.totalorder %s25, 1
    %p69 = por %p67, %p68
    %p71 = scmp.ne.s32.totalorder %s56, %s70
    %p72 = scmp.eq.s32.totalorder %s25, 0
    %p73 = por %p71, %p72
    %s75 = sadd.s32 %s74, 1
    %p78 = scmp.eq.s32.totalorder %s19, 1
    %p79 = scmp.ne.s32.totalorder %s74, %s76
    %p80 = scmp.eq.s32.totalorder %s19, 0
    %p81 = por %p79, %p80
    %p82 = scmp.ne.s32.totalorder %s74, %s76
    %p83 = scmp.eq.s32.totalorder %s24, 1
    %p84 = por %p82, %p83
    %p85 = scmp.ne.s32.totalorder %s76, %s77
    %p86 = scmp.eq.s32.totalorder %s24, 0
    %p87 = por %p85, %p86
    %p88 = scmp.ne.s32.totalorder %s76, %s77
    %p89 = scmp.eq.s32.totalorder %s25, 1
    %p90 = por %p88, %p89
    %p92 = scmp.ne.s32.totalorder %s77, %s91
    %p93 = scmp.eq.s32.totalorder %s25, 0
    %p94 = por %p92, %p93
    %s96 = sadd.s32 %s95, 1
    %p99 = scmp.eq.s32.totalorder %s19, 1
    %p100 = scmp.ne.s32.totalorder %s95, %s97
    %p101 = scmp.eq.s32.totalorder %s19, 0
    %p102 = por %p100, %p101
    %p103 = scmp.ne.s32.totalorder %s95, %s97
    %p104 = scmp.eq.s32.totalorder %s24, 1
    %p105 = por %p103, %p104
    %p106 = scmp.ne.s32.totalorder %s97, %s98
    %p107 = scmp.eq.s32.totalorder %s24, 0
    %p108 = por %p106, %p107
    %p109 = scmp.ne.s32.totalorder %s97, %s98
    %p110 = scmp.eq.s32.totalorder %s25, 1
    %p111 = por %p109, %p110
    %p113 = scmp.ne.s32.totalorder %s98, %s112
    %p114 = scmp.eq.s32.totalorder %s25, 0
    %p115 = por %p113, %p114
    %s117 = sadd.s32 %s116, 1
    %p120 = scmp.eq.s32.totalorder %s19, 1
    %p121 = scmp.ne.s32.totalorder %s116, %s118
    %p122 = scmp.eq.s32.totalorder %s19, 0
    %p123 = por %p121, %p122
    %p124 = scmp.ne.s32.totalorder %s116, %s118
    %p125 = scmp.eq.s32.totalorder %s24, 1
    %p126 = por %p124, %p125
    %p127 = scmp.ne.s32.totalorder %s118, %s119
    %p128 = scmp.eq.s32.totalorder %s24, 0
    %p129 = por %p127, %p128
    %p130 = scmp.ne.s32.totalorder %s118, %s119
    %p131 = scmp.eq.s32.totalorder %s25, 1
    %p132 = por %p130, %p131
    %p134 = scmp.ne.s32.totalorder %s119, %s133
    %p135 = scmp.eq.s32.totalorder %s25, 0
    %p136 = por %p134, %p135
    %s138 = sadd.s32 %s137, 1
    %p141 = scmp.eq.s32.totalorder %s19, 1
    %p142 = scmp.ne.s32.totalorder %s137, %s139
    %p143 = scmp.eq.s32.totalorder %s19, 0
    %p144 = por %p142, %p143
    %p145 = scmp.ne.s32.totalorder %s137, %s139
    %p146 = scmp.eq.s32.totalorder %s24, 1
    %p147 = por %p145, %p146
    %p148 = scmp.ne.s32.totalorder %s139, %s140
    %p149 = scmp.eq.s32.totalorder %s24, 0
    %p150 = por %p148, %p149
    %p151 = scmp.ne.s32.totalorder %s139, %s140
    %p152 = scmp.eq.s32.totalorder %s25, 1
    %p153 = por %p151, %p152
    %p155 = scmp.ne.s32.totalorder %s140, %s154
    %p156 = scmp.eq.s32.totalorder %s25, 0
    %p157 = por %p155, %p156
    %s159 = sadd.s32 %s158, 1
    %p162 = scmp.eq.s32.totalorder %s19, 1
    %p163 = scmp.ne.s32.totalorder %s158, %s160
    %p164 = scmp.eq.s32.totalorder %s19, 0
    %p165 = por %p163, %p164
    %p166 = scmp.ne.s32.totalorder %s158, %s160
    %p167 = scmp.eq.s32.totalorder %s24, 1
    %p168 = por %p166, %p167
    %p169 = scmp.ne.s32.totalorder %s160, %s161
    %p170 = scmp.eq.s32.totalorder %s24, 0
    %p171 = por %p169, %p170
    %p172 = scmp.ne.s32.totalorder %s160, %s161
    %p173 = scmp.eq.s32.totalorder %s25, 1
    %p174 = por %p172, %p173
    %p176 = scmp.ne.s32.totalorder %s161, %s175
    %p177 = scmp.eq.s32.totalorder %s25, 0
    %p178 = por %p176, %p177
    %s180 = sadd.s32 %s179, 1
    %p183 = scmp.eq.s32.totalorder %s19, 1
    %p184 = scmp.ne.s32.totalorder %s179, %s181
    %p185 = scmp.eq.s32.totalorder %s19, 0
    %p186 = por %p184, %p185
    %p187 = scmp.ne.s32.totalorder %s179, %s181
    %p188 = scmp.eq.s32.totalorder %s24, 1
    %p189 = por %p187, %p188
    %p190 = scmp.ne.s32.totalorder %s181, %s182
    %p191 = scmp.eq.s32.totalorder %s24, 0
    %p192 = por %p190, %p191
    %p193 = scmp.ne.s32.totalorder %s181, %s182
    %p194 = scmp.eq.s32.totalorder %s25, 1
    %p195 = por %p193, %p194
    %p197 = scmp.ne.s32.totalorder %s182, %s196
    %p198 = scmp.eq.s32.totalorder %s25, 0
    %p199 = por %p197, %p198
    %s201 = sadd.s32 %s200, 1
    %p204 = scmp.eq.s32.totalorder %s19, 1
    %p205 = scmp.ne.s32.totalorder %s200, %s202
    %p206 = scmp.eq.s32.totalorder %s19, 0
    %p207 = por %p205, %p206
    %p208 = scmp.ne.s32.totalorder %s200, %s202
    %p209 = scmp.eq.s32.totalorder %s24, 1
    %p210 = por %p208, %p209
    %p211 = scmp.ne.s32.totalorder %s202, %s203
    %p212 = scmp.eq.s32.totalorder %s24, 0
    %p213 = por %p211, %p212
    %p214 = scmp.ne.s32.totalorder %s202, %s203
    %p215 = scmp.eq.s32.totalorder %s25, 1
    %p216 = por %p214, %p215
    %p218 = scmp.ne.s32.totalorder %s203, %s217
    %p219 = scmp.eq.s32.totalorder %s25, 0
    %p220 = por %p218, %p219
    %s222 = sadd.s32 %s221, 1
    %p225 = scmp.eq.s32.totalorder %s19, 1
    %p226 = scmp.ne.s32.totalorder %s221, %s223
    %p227 = scmp.eq.s32.totalorder %s19, 0
    %p228 = por %p226, %p227
    %p229 = scmp.ne.s32.totalorder %s221, %s223
    %p230 = scmp.eq.s32.totalorder %s24, 1
    %p231 = por %p229, %p230
    %p232 = scmp.ne.s32.totalorder %s223, %s224
    %p233 = scmp.eq.s32.totalorder %s24, 0
    %p234 = por %p232, %p233
    %p235 = scmp.ne.s32.totalorder %s223, %s224
    %p236 = scmp.eq.s32.totalorder %s25, 1
    %p237 = por %p235, %p236
    %p239 = scmp.ne.s32.totalorder %s224, %s238
    %p240 = scmp.eq.s32.totalorder %s25, 0
    %p241 = por %p239, %p240
    %s243 = sadd.s32 %s242, 1
    %p246 = scmp.eq.s32.totalorder %s19, 1
    %p247 = scmp.ne.s32.totalorder %s242, %s244
    %p248 = scmp.eq.s32.totalorder %s19, 0
    %p249 = por %p247, %p248
    %p250 = scmp.ne.s32.totalorder %s242, %s244
    %p251 = scmp.eq.s32.totalorder %s24, 1
    %p252 = por %p250, %p251
    %p253 = scmp.ne.s32.totalorder %s244, %s245
    %p254 = scmp.eq.s32.totalorder %s24, 0
    %p255 = por %p253, %p254
    %p256 = scmp.ne.s32.totalorder %s244, %s245
    %p257 = scmp.eq.s32.totalorder %s25, 1
    %p258 = por %p256, %p257
    %p260 = scmp.ne.s32.totalorder %s245, %s259
    %p261 = scmp.eq.s32.totalorder %s25, 0
    %p262 = por %p260, %p261
    %s264 = sadd.s32 %s263, 1
    %p267 = scmp.eq.s32.totalorder %s19, 1
    %p268 = scmp.ne.s32.totalorder %s263, %s265
    %p269 = scmp.eq.s32.totalorder %s19, 0
    %p270 = por %p268, %p269
    %p271 = scmp.ne.s32.totalorder %s263, %s265
    %p272 = scmp.eq.s32.totalorder %s24, 1
    %p273 = por %p271, %p272
    %p274 = scmp.ne.s32.totalorder %s265, %s266
    %p275 = scmp.eq.s32.totalorder %s24, 0
    %p276 = por %p274, %p275
    %p277 = scmp.ne.s32.totalorder %s265, %s266
    %p278 = scmp.eq.s32.totalorder %s25, 1
    %p279 = por %p277, %p278
    %p281 = scmp.ne.s32.totalorder %s266, %s280
    %p282 = scmp.eq.s32.totalorder %s25, 0
    %p283 = por %p281, %p282
    %s285 = sadd.s32 %s284, 1
    %p288 = scmp.eq.s32.totalorder %s19, 1
    %p289 = scmp.ne.s32.totalorder %s284, %s286
    %p290 = scmp.eq.s32.totalorder %s19, 0
    %p291 = por %p289, %p290
    %p292 = scmp.ne.s32.totalorder %s284, %s286
    %p293 = scmp.eq.s32.totalorder %s24, 1
    %p294 = por %p292, %p293
    %p295 = scmp.ne.s32.totalorder %s286, %s287
    %p296 = scmp.eq.s32.totalorder %s24, 0
    %p297 = por %p295, %p296
    %p298 = scmp.ne.s32.totalorder %s286, %s287
    %p299 = scmp.eq.s32.totalorder %s25, 1
    %p300 = por %p298, %p299
    %p302 = scmp.ne.s32.totalorder %s287, %s301
    %p303 = scmp.eq.s32.totalorder %s25, 0
    %p304 = por %p302, %p303
    %s305 = ssub.s32 %s19, %s26
    %p306 = scmp.eq.s32.totalorder %s305, 0
    %s308 = sadd.s32 %s307, 1
    %s309 = scalar_select %p306, %s307, %s308
    %p312 = pneg %p306
    %p313 = scmp.eq.s32.totalorder %s19, 1
    %p314 = por %p312, %p313
    %p315 = scmp.ne.s32.totalorder %s307, %s310
    %p316 = scmp.eq.s32.totalorder %s19, 0
    %p317 = por %p315, %p316
    %p318 = scmp.ne.s32.totalorder %s307, %s310
    %p319 = scmp.eq.s32.totalorder %s24, 1
    %p320 = por %p318, %p319
    %p321 = scmp.ne.s32.totalorder %s310, %s311
    %p322 = scmp.eq.s32.totalorder %s24, 0
    %p323 = por %p321, %p322
    %p324 = scmp.ne.s32.totalorder %s310, %s311
    %p325 = scmp.eq.s32.totalorder %s25, 1
    %p326 = por %p324, %p325
    %p328 = scmp.ne.s32.totalorder %s311, %s327
    %p329 = scmp.eq.s32.totalorder %s25, 0
    %p330 = por %p328, %p329
    %p331 = scmp.le.s32.totalorder 1, %s19
    %p332 = scmp.lt.s32.totalorder %s19, 3
    %p333 = pnand %p331, %p332
    %p334 = pneg %p333
    // Predicated region
    $region9: #{lenet_forward.1} parent=5 // pred_check
      _
    $region10: #{lenet_forward.1} parent=5 // pred_check_branch
      %336 = sbr.rel (%p333) target = $region12
    $region11: #{lenet_forward.1} parent=5 // pred_region
      %s337 = ssub.s32 %s19, 1
      // Predicated region
      $region13: #{lenet_forward.1} parent=11 // pred_check
        %p338 = pneg %p66
      $region14: #{lenet_forward.1} parent=11 // pred_check_branch
        %340 = sbr.rel (%p338) target = $region16
      $region15: #{lenet_forward.1} parent=11 // pred_region
        _
      $region16: #{lenet_forward.1} parent=11 // pred_fallthru
        _
      // Predicated region
      $region17: #{lenet_forward.1} parent=11 // pred_check
        %p341 = pneg %p87
      $region18: #{lenet_forward.1} parent=11 // pred_check_branch
        %343 = sbr.rel (%p341) target = $region20
      $region19: #{lenet_forward.1} parent=11 // pred_region
        _
      $region20: #{lenet_forward.1} parent=11 // pred_fallthru
        _
      // Predicated region
      $region21: #{lenet_forward.1} parent=11 // pred_check
        %p344 = pneg %p108
      $region22: #{lenet_forward.1} parent=11 // pred_check_branch
        %346 = sbr.rel (%p344) target = $region24
      $region23: #{lenet_forward.1} parent=11 // pred_region
        _
      $region24: #{lenet_forward.1} parent=11 // pred_fallthru
        _
      // Predicated region
      $region25: #{lenet_forward.1} parent=11 // pred_check
        %p347 = pneg %p129
      $region26: #{lenet_forward.1} parent=11 // pred_check_branch
        %349 = sbr.rel (%p347) target = $region28
      $region27: #{lenet_forward.1} parent=11 // pred_region
        _
      $region28: #{lenet_forward.1} parent=11 // pred_fallthru
        _
      // Predicated region
      $region29: #{lenet_forward.1} parent=11 // pred_check
        %p350 = pneg %p150
      $region30: #{lenet_forward.1} parent=11 // pred_check_branch
        %352 = sbr.rel (%p350) target = $region32
      $region31: #{lenet_forward.1} parent=11 // pred_region
        _
      $region32: #{lenet_forward.1} parent=11 // pred_fallthru
        _
      // Predicated region
      $region33: #{lenet_forward.1} parent=11 // pred_check
        %p353 = pneg %p171
      $region34: #{lenet_forward.1} parent=11 // pred_check_branch
        %355 = sbr.rel (%p353) target = $region36
      $region35: #{lenet_forward.1} parent=11 // pred_region
        _
      $region36: #{lenet_forward.1} parent=11 // pred_fallthru
        _
      // Predicated region
      $region37: #{lenet_forward.1} parent=11 // pred_check
        %p356 = pneg %p192
      $region38: #{lenet_forward.1} parent=11 // pred_check_branch
        %358 = sbr.rel (%p356) target = $region40
      $region39: #{lenet_forward.1} parent=11 // pred_region
        _
      $region40: #{lenet_forward.1} parent=11 // pred_fallthru
        _
      // Predicated region
      $region41: #{lenet_forward.1} parent=11 // pred_check
        %p359 = pneg %p213
      $region42: #{lenet_forward.1} parent=11 // pred_check_branch
        %361 = sbr.rel (%p359) target = $region44
      $region43: #{lenet_forward.1} parent=11 // pred_region
        _
      $region44: #{lenet_forward.1} parent=11 // pred_fallthru
        _
      // Predicated region
      $region45: #{lenet_forward.1} parent=11 // pred_check
        %p362 = pneg %p234
      $region46: #{lenet_forward.1} parent=11 // pred_check_branch
        %364 = sbr.rel (%p362) target = $region48
      $region47: #{lenet_forward.1} parent=11 // pred_region
        _
      $region48: #{lenet_forward.1} parent=11 // pred_fallthru
        _
      // Predicated region
      $region49: #{lenet_forward.1} parent=11 // pred_check
        %p365 = pneg %p255
      $region50: #{lenet_forward.1} parent=11 // pred_check_branch
        %367 = sbr.rel (%p365) target = $region52
      $region51: #{lenet_forward.1} parent=11 // pred_region
        _
      $region52: #{lenet_forward.1} parent=11 // pred_fallthru
        _
      // Predicated region
      $region53: #{lenet_forward.1} parent=11 // pred_check
        %p368 = pneg %p276
      $region54: #{lenet_forward.1} parent=11 // pred_check_branch
        %370 = sbr.rel (%p368) target = $region56
      $region55: #{lenet_forward.1} parent=11 // pred_region
        _
      $region56: #{lenet_forward.1} parent=11 // pred_fallthru
        _
      // Predicated region
      $region57: #{lenet_forward.1} parent=11 // pred_check
        %p371 = pneg %p297
      $region58: #{lenet_forward.1} parent=11 // pred_check_branch
        %373 = sbr.rel (%p371) target = $region60
      $region59: #{lenet_forward.1} parent=11 // pred_region
        _
      $region60: #{lenet_forward.1} parent=11 // pred_fallthru
        _
    $region12: #{lenet_forward.1} parent=5 // pred_fallthru
      _
    %p374 = scmp.lt.s32.totalorder %s19, 2
    // Predicated region
    $region61: #{lenet_forward.1} parent=5 // pred_check
      %p375 = pneg %p374
    $region62: #{lenet_forward.1} parent=5 // pred_check_branch
      %377 = sbr.rel (%p375) target = $region64
    $region63: #{lenet_forward.1} parent=5 // pred_region
      // Predicated region
      $region65: #{lenet_forward.1} parent=63 // pred_check
        %p378 = pneg %p39
      $region66: #{lenet_forward.1} parent=63 // pred_check_branch
        %380 = sbr.rel (%p378) target = $region68
      $region67: #{lenet_forward.1} parent=63 // pred_region
        %s381 = smul.u32 2, %s19
        %p382 = scmp.lt.s32.totalorder %s381, 3
        %s383 = scalar_select %p382, %s381, 3
        %s384 = smul.addr %s383, 2
        %s385 = smul.addr %s384, 4
        %s386 = scalar_lea.vmem %s0, %s385
        %s387 = smul.u32 2, %s19
      $region68: #{lenet_forward.1} parent=63 // pred_fallthru
        _
    $region64: #{lenet_forward.1} parent=5 // pred_fallthru
      _
    %p388 = scmp.le.s32.totalorder 1, %s19
    %p389 = scmp.lt.s32.totalorder %s19, 3
    %p390 = pnand %p388, %p389
    %p391 = pneg %p390
    // Predicated region
    $region69: #{lenet_forward.1} parent=5 // pred_check
      _
    $region70: #{lenet_forward.1} parent=5 // pred_check_branch
      %393 = sbr.rel (%p390) target = $region72
    $region71: #{lenet_forward.1} parent=5 // pred_region
      %s394 = ssub.s32 %s19, 1
      %s395 = smul.u32 2, %s24
      %p396 = scmp.lt.s32.totalorder %s395, 3
      %s397 = scalar_select %p396, %s395, 3
      %s398 = smul.addr %s397, 2
      %s399 = smul.addr %s398, 4
      %s400 = scalar_lea.vmem %s0, %s399
      %p401 = pneg %p45
      %p402 = pneg %p42
      %p403 = pneg %p66
      %p404 = pneg %p63
      %p405 = pneg %p87
      %p406 = pneg %p84
      %p407 = pneg %p108
      %p408 = pneg %p105
      %p409 = pneg %p129
      %p410 = pneg %p126
      %p411 = pneg %p150
      %p412 = pneg %p147
      %p413 = pneg %p171
      %p414 = pneg %p168
      %p415 = pneg %p192
      %p416 = pneg %p189
      %p417 = pneg %p213
      %p418 = pneg %p210
      %p419 = pneg %p234
      %p420 = pneg %p231
      %p421 = pneg %p255
      %p422 = pneg %p252
      %p423 = pneg %p276
      %p424 = pneg %p273
      %p425 = pneg %p297
      %p426 = pneg %p294
      %p427 = pneg %p323
      %p428 = pneg %p320
      %p429 = scmp.lt.s32.totalorder %s24, 1
      %s430 = scalar_select %p429, %s24, 1
      %s431 = smul.addr %s430, 8
      %s432 = scalar_lea.vmem %s13, %s431
      %s433 = smul.u32 2, %s24
      %p434 = scmp.lt.s32.totalorder %s433, 3
      %s435 = scalar_select %p434, %s433, 3
      %s436 = smul.addr %s435, 2
      %s437 = smul.addr %s436, 4
      %s438 = scalar_lea.vmem %s0, %s437
      %s439 = smul.u32 2, %s24
      %p440 = scmp.lt.s32.totalorder %s24, 1
      %s441 = scalar_select %p440, %s24, 1
      %s442 = smul.addr %s441, 8
      %s443 = scalar_lea.vmem %s13, %s442
      %v445 = vld [vmem:[%s438] sm:$0xff]
      %v446 = vld [vmem:[%s438 + $0x8] sm:$0xff]
      %v447 = vld [vmem:[%s1] sm:$0xff]
      %v448 = vld [vmem:[%s1 + $0x8] sm:$0xff]
      %v449 = vld [vmem:[%s1 + $0x10] sm:$0xff]
      %v450 = vld [vmem:[%s1 + $0x18] sm:$0xff]
      %v451 = vld [vmem:[%s1 + $0x20] sm:$0xff]
      %v452 = vld [vmem:[%s1 + $0x28] sm:$0xff]
      %v453 = vld [vmem:[%s1 + $0x30] sm:$0xff]
      %v454 = vld [vmem:[%s1 + $0x38] sm:$0xff]
      %v455 = vld [vmem:[%s1 + $0x40] sm:$0xff]
      %v456 = vld [vmem:[%s1 + $0x48] sm:$0xff]
      %v457 = vld [vmem:[%s1 + $0x50] sm:$0xff]
      %v458 = vld [vmem:[%s1 + $0x58] sm:$0xff]
      %v459 = vld [vmem:[%s1 + $0x60] sm:$0xff]
      %v460 = vld [vmem:[%s1 + $0x68] sm:$0xff]
      %v461 = vld [vmem:[%s1 + $0x70] sm:$0xff]
      %v462 = vld [vmem:[%s1 + $0x78] sm:$0xff]
      %v463 = vld [vmem:[%s1 + $0x80] sm:$0xff]
      %v464 = vld [vmem:[%s1 + $0x88] sm:$0xff]
      %v465 = vld [vmem:[%s1 + $0x90] sm:$0xff]
      %v466 = vld [vmem:[%s1 + $0x98] sm:$0xff]
      %v467 = vld [vmem:[%s1 + $0xa0] sm:$0xff]
      %v468 = vld [vmem:[%s1 + $0xa8] sm:$0xff]
      %v469 = vld [vmem:[%s1 + $0xb0] sm:$0xff]
      %v470 = vld [vmem:[%s1 + $0xb8] sm:$0xff]
      %v471 = vld [vmem:[%s1 + $0xc0] sm:$0xff]
      %v472 = vld [vmem:[%s1 + $0xc8] sm:$0xff]
      %v473 = vld [vmem:[%s1 + $0xd0] sm:$0xff]
      %v474 = vld [vmem:[%s1 + $0xd8] sm:$0xff]
      %v475 = vld [vmem:[%s1 + $0xe0] sm:$0xff]
      %v476 = vld [vmem:[%s1 + $0xe8] sm:$0xff]
      %v477 = vld [vmem:[%s1 + $0xf0] sm:$0xff]
      %v478 = vld [vmem:[%s1 + $0xf8] sm:$0xff]
      %v479 = vld [vmem:[%s1 + $0x100] sm:$0xff]
      %v480 = vld [vmem:[%s1 + $0x108] sm:$0xff]
      %v481 = vld [vmem:[%s1 + $0x110] sm:$0xff]
      %v482 = vld [vmem:[%s1 + $0x118] sm:$0xff]
      %v483 = vld [vmem:[%s1 + $0x120] sm:$0xff]
      %v484 = vld [vmem:[%s1 + $0x128] sm:$0xff]
      %v485 = vld [vmem:[%s1 + $0x130] sm:$0xff]
      %v486 = vld [vmem:[%s1 + $0x138] sm:$0xff]
      %v487 = vld [vmem:[%s1 + $0x140] sm:$0xff]
      %v488 = vld [vmem:[%s1 + $0x148] sm:$0xff]
      %v489 = vld [vmem:[%s1 + $0x150] sm:$0xff]
      %v490 = vld [vmem:[%s1 + $0x158] sm:$0xff]
      %v491 = vld [vmem:[%s1 + $0x160] sm:$0xff]
      %v492 = vld [vmem:[%s1 + $0x168] sm:$0xff]
      %v493 = vld [vmem:[%s1 + $0x170] sm:$0xff]
      %v494 = vld [vmem:[%s1 + $0x178] sm:$0xff]
      %v495 = vld [vmem:[%s1 + $0x180] sm:$0xff]
      %v496 = vld [vmem:[%s1 + $0x188] sm:$0xff]
      %v497 = vld [vmem:[%s1 + $0x190] sm:$0xff]
      %v498 = vld [vmem:[%s1 + $0x198] sm:$0xff]
      %v499 = vld [vmem:[%s1 + $0x1a0] sm:$0xff]
      %v500 = vld [vmem:[%s1 + $0x1a8] sm:$0xff]
      %v501 = vld [vmem:[%s1 + $0x1b0] sm:$0xff]
      %v502 = vld [vmem:[%s1 + $0x1b8] sm:$0xff]
      %v503 = vld [vmem:[%s1 + $0x1c0] sm:$0xff]
      %v504 = vld [vmem:[%s1 + $0x1c8] sm:$0xff]
      %v505 = vld [vmem:[%s1 + $0x1d0] sm:$0xff]
      %v506 = vld [vmem:[%s1 + $0x1d8] sm:$0xff]
      %v507 = vld [vmem:[%s1 + $0x1e0] sm:$0xff]
      %v508 = vld [vmem:[%s1 + $0x1e8] sm:$0xff]
      %v509 = vld [vmem:[%s1 + $0x1f0] sm:$0xff]
      %v510 = vld [vmem:[%s1 + $0x1f8] sm:$0xff]
      %v513 = vunpack.c.l.b16 %v445
      %v514 = vunpack.c.h.b16 %v445
      %v515 = vunpack.c.l.b16 %v446
      %v516 = vunpack.c.h.b16 %v446
      %v517 = vpack.c.b16 %v515, %v513
      %v518 = vpack.c.b16 %v516, %v514
      %v585 = vunpack.c.l.b16 %v447
      %v586 = vunpack.c.h.b16 %v447
      %v587 = vunpack.c.l.b16 %v448
      %v588 = vunpack.c.h.b16 %v448
      %v589 = vunpack.c.l.b16 %v449
      %v590 = vunpack.c.h.b16 %v449
      %v591 = vunpack.c.l.b16 %v450
      %v592 = vunpack.c.h.b16 %v450
      %v593 = vunpack.c.l.b16 %v451
      %v594 = vunpack.c.h.b16 %v451
      %v595 = vunpack.c.l.b16 %v452
      %v596 = vunpack.c.h.b16 %v452
      %v597 = vunpack.c.l.b16 %v453
      %v598 = vunpack.c.h.b16 %v453
      %v599 = vunpack.c.l.b16 %v454
      %v600 = vunpack.c.h.b16 %v454
      %v601 = vunpack.c.l.b16 %v455
      %v602 = vunpack.c.h.b16 %v455
      %v603 = vunpack.c.l.b16 %v456
      %v604 = vunpack.c.h.b16 %v456
      %v605 = vunpack.c.l.b16 %v457
      %v606 = vunpack.c.h.b16 %v457
      %v607 = vunpack.c.l.b16 %v458
      %v608 = vunpack.c.h.b16 %v458
      %v609 = vunpack.c.l.b16 %v459
      %v610 = vunpack.c.h.b16 %v459
      %v611 = vunpack.c.l.b16 %v460
      %v612 = vunpack.c.h.b16 %v460
      %v613 = vunpack.c.l.b16 %v461
      %v614 = vunpack.c.h.b16 %v461
      %v615 = vunpack.c.l.b16 %v462
      %v616 = vunpack.c.h.b16 %v462
      %v617 = vunpack.c.l.b16 %v463
      %v618 = vunpack.c.h.b16 %v463
      %v619 = vunpack.c.l.b16 %v464
      %v620 = vunpack.c.h.b16 %v464
      %v621 = vunpack.c.l.b16 %v465
      %v622 = vunpack.c.h.b16 %v465
      %v623 = vunpack.c.l.b16 %v466
      %v624 = vunpack.c.h.b16 %v466
      %v625 = vunpack.c.l.b16 %v467
      %v626 = vunpack.c.h.b16 %v467
      %v627 = vunpack.c.l.b16 %v468
      %v628 = vunpack.c.h.b16 %v468
      %v629 = vunpack.c.l.b16 %v469
      %v630 = vunpack.c.h.b16 %v469
      %v631 = vunpack.c.l.b16 %v470
      %v632 = vunpack.c.h.b16 %v470
      %v633 = vunpack.c.l.b16 %v471
      %v634 = vunpack.c.h.b16 %v471
      %v635 = vunpack.c.l.b16 %v472
      %v636 = vunpack.c.h.b16 %v472
      %v637 = vunpack.c.l.b16 %v473
      %v638 = vunpack.c.h.b16 %v473
      %v639 = vunpack.c.l.b16 %v474
      %v640 = vunpack.c.h.b16 %v474
      %v641 = vunpack.c.l.b16 %v475
      %v642 = vunpack.c.h.b16 %v475
      %v643 = vunpack.c.l.b16 %v476
      %v644 = vunpack.c.h.b16 %v476
      %v645 = vunpack.c.l.b16 %v477
      %v646 = vunpack.c.h.b16 %v477
      %v647 = vunpack.c.l.b16 %v478
      %v648 = vunpack.c.h.b16 %v478
      %v649 = vunpack.c.l.b16 %v479
      %v650 = vunpack.c.h.b16 %v479
      %v651 = vunpack.c.l.b16 %v480
      %v652 = vunpack.c.h.b16 %v480
      %v653 = vunpack.c.l.b16 %v481
      %v654 = vunpack.c.h.b16 %v481
      %v655 = vunpack.c.l.b16 %v482
      %v656 = vunpack.c.h.b16 %v482
      %v657 = vunpack.c.l.b16 %v483
      %v658 = vunpack.c.h.b16 %v483
      %v659 = vunpack.c.l.b16 %v484
      %v660 = vunpack.c.h.b16 %v484
      %v661 = vunpack.c.l.b16 %v485
      %v662 = vunpack.c.h.b16 %v485
      %v663 = vunpack.c.l.b16 %v486
      %v664 = vunpack.c.h.b16 %v486
      %v665 = vunpack.c.l.b16 %v487
      %v666 = vunpack.c.h.b16 %v487
      %v667 = vunpack.c.l.b16 %v488
      %v668 = vunpack.c.h.b16 %v488
      %v669 = vunpack.c.l.b16 %v489
      %v670 = vunpack.c.h.b16 %v489
      %v671 = vunpack.c.l.b16 %v490
      %v672 = vunpack.c.h.b16 %v490
      %v673 = vunpack.c.l.b16 %v491
      %v674 = vunpack.c.h.b16 %v491
      %v675 = vunpack.c.l.b16 %v492
      %v676 = vunpack.c.h.b16 %v492
      %v677 = vunpack.c.l.b16 %v493
      %v678 = vunpack.c.h.b16 %v493
      %v679 = vunpack.c.l.b16 %v494
      %v680 = vunpack.c.h.b16 %v494
      %v681 = vunpack.c.l.b16 %v495
      %v682 = vunpack.c.h.b16 %v495
      %v683 = vunpack.c.l.b16 %v496
      %v684 = vunpack.c.h.b16 %v496
      %v685 = vunpack.c.l.b16 %v497
      %v686 = vunpack.c.h.b16 %v497
      %v687 = vunpack.c.l.b16 %v498
      %v688 = vunpack.c.h.b16 %v498
      %v689 = vunpack.c.l.b16 %v499
      %v690 = vunpack.c.h.b16 %v499
      %v691 = vunpack.c.l.b16 %v500
      %v692 = vunpack.c.h.b16 %v500
      %v693 = vunpack.c.l.b16 %v501
      %v694 = vunpack.c.h.b16 %v501
      %v695 = vunpack.c.l.b16 %v502
      %v696 = vunpack.c.h.b16 %v502
      %v697 = vunpack.c.l.b16 %v503
      %v698 = vunpack.c.h.b16 %v503
      %v699 = vunpack.c.l.b16 %v504
      %v700 = vunpack.c.h.b16 %v504
      %v701 = vunpack.c.l.b16 %v505
      %v702 = vunpack.c.h.b16 %v505
      %v703 = vunpack.c.l.b16 %v506
      %v704 = vunpack.c.h.b16 %v506
      %v705 = vunpack.c.l.b16 %v507
      %v706 = vunpack.c.h.b16 %v507
      %v707 = vunpack.c.l.b16 %v508
      %v708 = vunpack.c.h.b16 %v508
      %v709 = vunpack.c.l.b16 %v509
      %v710 = vunpack.c.h.b16 %v509
      %v711 = vunpack.c.l.b16 %v510
      %v712 = vunpack.c.h.b16 %v510
      %v713 = vpack.c.b16 %v589, %v585
      %v714 = vpack.c.b16 %v590, %v586
      %v715 = vpack.c.b16 %v591, %v587
      %v716 = vpack.c.b16 %v592, %v588
      %v717 = vpack.c.b16 %v597, %v593
      %v718 = vpack.c.b16 %v598, %v594
      %v719 = vpack.c.b16 %v599, %v595
      %v720 = vpack.c.b16 %v600, %v596
      %v721 = vpack.c.b16 %v605, %v601
      %v722 = vpack.c.b16 %v606, %v602
      %v723 = vpack.c.b16 %v607, %v603
      %v724 = vpack.c.b16 %v608, %v604
      %v725 = vpack.c.b16 %v613, %v609
      %v726 = vpack.c.b16 %v614, %v610
      %v727 = vpack.c.b16 %v615, %v611
      %v728 = vpack.c.b16 %v616, %v612
      %v729 = vpack.c.b16 %v621, %v617
      %v730 = vpack.c.b16 %v622, %v618
      %v731 = vpack.c.b16 %v623, %v619
      %v732 = vpack.c.b16 %v624, %v620
      %v733 = vpack.c.b16 %v629, %v625
      %v734 = vpack.c.b16 %v630, %v626
      %v735 = vpack.c.b16 %v631, %v627
      %v736 = vpack.c.b16 %v632, %v628
      %v737 = vpack.c.b16 %v637, %v633
      %v738 = vpack.c.b16 %v638, %v634
      %v739 = vpack.c.b16 %v639, %v635
      %v740 = vpack.c.b16 %v640, %v636
      %v741 = vpack.c.b16 %v645, %v641
      %v742 = vpack.c.b16 %v646, %v642
      %v743 = vpack.c.b16 %v647, %v643
      %v744 = vpack.c.b16 %v648, %v644
      %v745 = vpack.c.b16 %v653, %v649
      %v746 = vpack.c.b16 %v654, %v650
      %v747 = vpack.c.b16 %v655, %v651
      %v748 = vpack.c.b16 %v656, %v652
      %v749 = vpack.c.b16 %v661, %v657
      %v750 = vpack.c.b16 %v662, %v658
      %v751 = vpack.c.b16 %v663, %v659
      %v752 = vpack.c.b16 %v664, %v660
      %v753 = vpack.c.b16 %v669, %v665
      %v754 = vpack.c.b16 %v670, %v666
      %v755 = vpack.c.b16 %v671, %v667
      %v756 = vpack.c.b16 %v672, %v668
      %v757 = vpack.c.b16 %v677, %v673
      %v758 = vpack.c.b16 %v678, %v674
      %v759 = vpack.c.b16 %v679, %v675
      %v760 = vpack.c.b16 %v680, %v676
      %v761 = vpack.c.b16 %v685, %v681
      %v762 = vpack.c.b16 %v686, %v682
      %v763 = vpack.c.b16 %v687, %v683
      %v764 = vpack.c.b16 %v688, %v684
      %v765 = vpack.c.b16 %v693, %v689
      %v766 = vpack.c.b16 %v694, %v690
      %v767 = vpack.c.b16 %v695, %v691
      %v768 = vpack.c.b16 %v696, %v692
      %v769 = vpack.c.b16 %v701, %v697
      %v770 = vpack.c.b16 %v702, %v698
      %v771 = vpack.c.b16 %v703, %v699
      %v772 = vpack.c.b16 %v704, %v700
      %v773 = vpack.c.b16 %v709, %v705
      %v774 = vpack.c.b16 %v710, %v706
      %v775 = vpack.c.b16 %v711, %v707
      %v776 = vpack.c.b16 %v712, %v708
      %841 = vmatprep.subr.bf16.mxu0 %v742
      %842 = vmatpush1.bf16.msra.mxu0 %v741
      %843 = vmatprep.subr.bf16.mxu0 %v738
      %844 = vmatpush1.bf16.msra.mxu0 %v737
      %845 = vmatprep.subr.bf16.mxu0 %v734
      %846 = vmatpush1.bf16.msra.mxu0 %v733
      %847 = vmatprep.subr.bf16.mxu0 %v730
      %848 = vmatpush1.bf16.msra.mxu0 %v729
      %849 = vmatprep.subr.bf16.mxu0 %v726
      %850 = vmatpush1.bf16.msra.mxu0 %v725
      %851 = vmatprep.subr.bf16.mxu0 %v722
      %852 = vmatpush1.bf16.msra.mxu0 %v721
      %853 = vmatprep.subr.bf16.mxu0 %v718
      %854 = vmatpush1.bf16.msra.mxu0 %v717
      %855 = vmatprep.subr.bf16.mxu0 %v714
      %856 = vmatpush1.bf16.msra.mxu0 %v713
      %857 = vmatprep.subr.bf16.mxu0 %v774
      %858 = vmatpush2.bf16.msra.mxu0 %v773
      %859 = vmatprep.subr.bf16.mxu0 %v770
      %860 = vmatpush2.bf16.msra.mxu0 %v769
      %861 = vmatprep.subr.bf16.mxu0 %v766
      %862 = vmatpush2.bf16.msra.mxu0 %v765
      %863 = vmatprep.subr.bf16.mxu0 %v762
      %864 = vmatpush2.bf16.msra.mxu0 %v761
      %865 = vmatprep.subr.bf16.mxu0 %v758
      %866 = vmatpush2.bf16.msra.mxu0 %v757
      %867 = vmatprep.subr.bf16.mxu0 %v754
      %868 = vmatpush2.bf16.msra.mxu0 %v753
      %869 = vmatprep.subr.bf16.mxu0 %v750
      %870 = vmatpush2.bf16.msra.mxu0 %v749
      %871 = vmatprep.subr.bf16.mxu0 %v746
      %872 = vmatpush2.bf16.msra.mxu0 %v745
      %873 = vmatprep.mubr.bf16.mxu0 %v518
      %874 = vmatmul.mubr.bf16.gmra.mxu0 %v517
      %v875 = vpop.f32.mrf.mxu0
      %v876 = vadd.f32 0.0, %v875
      %v877 = vpop.f32.mrf.mxu0
      %v878 = vadd.f32 0.0, %v877
      %v879 = vpop.f32.mrf.mxu0
      %v880 = vadd.f32 0.0, %v879
      %v881 = vpop.f32.mrf.mxu0
      %v882 = vadd.f32 0.0, %v881
      %883 = vdwg.mxu0
      %884 = vmatprep.subr.bf16.mxu0 %v744
      %885 = vmatpush1.bf16.msra.mxu0 %v743
      %886 = vmatprep.subr.bf16.mxu0 %v740
      %887 = vmatpush1.bf16.msra.mxu0 %v739
      %888 = vmatprep.subr.bf16.mxu0 %v736
      %889 = vmatpush1.bf16.msra.mxu0 %v735
      %890 = vmatprep.subr.bf16.mxu0 %v732
      %891 = vmatpush1.bf16.msra.mxu0 %v731
      %892 = vmatprep.subr.bf16.mxu0 %v728
      %893 = vmatpush1.bf16.msra.mxu0 %v727
      %894 = vmatprep.subr.bf16.mxu0 %v724
      %895 = vmatpush1.bf16.msra.mxu0 %v723
      %896 = vmatprep.subr.bf16.mxu0 %v720
      %897 = vmatpush1.bf16.msra.mxu0 %v719
      %898 = vmatprep.subr.bf16.mxu0 %v716
      %899 = vmatpush1.bf16.msra.mxu0 %v715
      %900 = vmatprep.subr.bf16.mxu0 %v776
      %901 = vmatpush2.bf16.msra.mxu0 %v775
      %902 = vmatprep.subr.bf16.mxu0 %v772
      %903 = vmatpush2.bf16.msra.mxu0 %v771
      %904 = vmatprep.subr.bf16.mxu0 %v768
      %905 = vmatpush2.bf16.msra.mxu0 %v767
      %906 = vmatprep.subr.bf16.mxu0 %v764
      %907 = vmatpush2.bf16.msra.mxu0 %v763
      %908 = vmatprep.subr.bf16.mxu0 %v760
      %909 = vmatpush2.bf16.msra.mxu0 %v759
      %910 = vmatprep.subr.bf16.mxu0 %v756
      %911 = vmatpush2.bf16.msra.mxu0 %v755
      %912 = vmatprep.subr.bf16.mxu0 %v752
      %913 = vmatpush2.bf16.msra.mxu0 %v751
      %914 = vmatprep.subr.bf16.mxu0 %v748
      %915 = vmatpush2.bf16.msra.mxu0 %v747
      %916 = vmatprep.mubr.bf16.mxu0 %v518
      %917 = vmatmul.mubr.bf16.gmra.mxu0 %v517
      %v918 = vpop.f32.mrf.mxu0
      %v919 = vadd.f32 0.0, %v918
      %v920 = vpop.f32.mrf.mxu0
      %v921 = vadd.f32 0.0, %v920
      %v922 = vpop.f32.mrf.mxu0
      %v923 = vadd.f32 0.0, %v922
      %v924 = vpop.f32.mrf.mxu0
      %v925 = vadd.f32 0.0, %v924
      %926 = vdwg.mxu0
      %v927 = vmax.f32 %v876, %v878
      %v928 = vmax.f32 %v880, %v882
      %v929 = vmax.f32 %v919, %v921
      %v930 = vmax.f32 %v923, %v925
      %v931 = vmax.f32 %v927, %v929
      %v932 = vmax.f32 %v928, %v930
      %v933 = vld [vmem:[%s2] sm:$0x1]
      %v935 = vlaneseq
      %v936 = vshrl.u32 %v935, 7
      %v937 = vsub.s32 0, %v936
      %v938 = vrot.slane %v933, %v937
      %v940 = vadd.f32 %v931, %v938
      %v941 = vadd.f32 %v932, %v938
      %v942 = vmax.f32 %v940, 0.0
      %v943 = vmax.f32 %v941, 0.0
      %vm947 = vcmask 1046528
      %v948 = vrot.slane %v942, 1
      %v949 = vrot.slane %v943, 1
      %v950 = vsel %vm947, %v948, %v949
      %v951 = vrot.slane 0.0, 1
      %v952 = vsel %vm947, %v949, %v951
      %vm955 = vcmask 1045504
      %v956 = vrot.slane %v942, 2
      %v957 = vrot.slane %v943, 2
      %v958 = vsel %vm955, %v956, %v957
      %v959 = vrot.slane 0.0, 2
      %v960 = vsel %vm955, %v957, %v959
      %vm963 = vcmask 1044480
      %v964 = vrot.slane %v942, 3
      %v965 = vrot.slane %v943, 3
      %v966 = vsel %vm963, %v964, %v965
      %v967 = vrot.slane 0.0, 3
      %v968 = vsel %vm963, %v965, %v967
      %vm971 = vcmask 1043456
      %v972 = vrot.slane %v942, 4
      %v973 = vrot.slane %v943, 4
      %v974 = vsel %vm971, %v972, %v973
      %v975 = vrot.slane 0.0, 4
      %v976 = vsel %vm971, %v973, %v975
      %v979 = vpack.c.bf16 %v943, %v942
      %v980 = vpack.c.bf16 %v952, %v950
      %v981 = vpack.c.bf16 %v960, %v958
      %v982 = vpack.c.bf16 %v968, %v966
      %v983 = vpack.c.bf16 %v976, %v974
      %v984 = vld [vmem:[%s3] sm:$0xff]
      %v985 = vld [vmem:[%s3 + $0x8] sm:$0xff]
      %v986 = vld [vmem:[%s3 + $0x10] sm:$0xff]
      %v987 = vld [vmem:[%s3 + $0x18] sm:$0xff]
      %v988 = vld [vmem:[%s3 + $0x20] sm:$0xff]
      %v989 = vld [vmem:[%s3 + $0x28] sm:$0xff]
      %v990 = vld [vmem:[%s3 + $0x30] sm:$0xff]
      %v991 = vld [vmem:[%s3 + $0x38] sm:$0xff]
      %v992 = vld [vmem:[%s3 + $0x40] sm:$0xff]
      %v993 = vld [vmem:[%s3 + $0x48] sm:$0xff]
      %v994 = vld [vmem:[%s3 + $0x50] sm:$0xff]
      %v995 = vld [vmem:[%s3 + $0x58] sm:$0xff]
      %v996 = vld [vmem:[%s3 + $0x60] sm:$0xff]
      %v997 = vld [vmem:[%s3 + $0x68] sm:$0xff]
      %v998 = vld [vmem:[%s3 + $0x70] sm:$0xff]
      %v999 = vld [vmem:[%s3 + $0x78] sm:$0xff]
      %v1000 = vld [vmem:[%s3 + $0x80] sm:$0xff]
      %v1001 = vld [vmem:[%s3 + $0x88] sm:$0xff]
      %v1002 = vld [vmem:[%s3 + $0x90] sm:$0xff]
      %v1003 = vld [vmem:[%s3 + $0x98] sm:$0xff]
      %v1004 = vld [vmem:[%s3 + $0xa0] sm:$0xff]
      %v1005 = vld [vmem:[%s3 + $0xa8] sm:$0xff]
      %v1006 = vld [vmem:[%s3 + $0xb0] sm:$0xff]
      %v1007 = vld [vmem:[%s3 + $0xb8] sm:$0xff]
      %v1008 = vld [vmem:[%s3 + $0xc0] sm:$0xff]
      %v1009 = vld [vmem:[%s3 + $0xc8] sm:$0xff]
      %v1010 = vld [vmem:[%s3 + $0xd0] sm:$0xff]
      %v1011 = vld [vmem:[%s3 + $0xd8] sm:$0xff]
      %v1012 = vld [vmem:[%s3 + $0xe0] sm:$0xff]
      %v1013 = vld [vmem:[%s3 + $0xe8] sm:$0xff]
      %v1014 = vld [vmem:[%s3 + $0xf0] sm:$0xff]
      %v1015 = vld [vmem:[%s3 + $0xf8] sm:$0xff]
      %v1016 = vld [vmem:[%s3 + $0x100] sm:$0xff]
      %v1017 = vld [vmem:[%s3 + $0x108] sm:$0xff]
      %v1018 = vld [vmem:[%s3 + $0x110] sm:$0xff]
      %v1019 = vld [vmem:[%s3 + $0x118] sm:$0xff]
      %v1020 = vld [vmem:[%s3 + $0x120] sm:$0xff]
      %v1021 = vld [vmem:[%s3 + $0x128] sm:$0xff]
      %v1022 = vld [vmem:[%s3 + $0x130] sm:$0xff]
      %v1023 = vld [vmem:[%s3 + $0x138] sm:$0xff]
      %v1024 = vld [vmem:[%s3 + $0x140] sm:$0xff]
      %v1025 = vld [vmem:[%s3 + $0x148] sm:$0xff]
      %v1026 = vld [vmem:[%s3 + $0x150] sm:$0xff]
      %v1027 = vld [vmem:[%s3 + $0x158] sm:$0xff]
      %v1028 = vld [vmem:[%s3 + $0x160] sm:$0xff]
      %v1029 = vld [vmem:[%s3 + $0x168] sm:$0xff]
      %v1030 = vld [vmem:[%s3 + $0x170] sm:$0xff]
      %v1031 = vld [vmem:[%s3 + $0x178] sm:$0xff]
      %v1032 = vld [vmem:[%s3 + $0x180] sm:$0xff]
      %v1033 = vld [vmem:[%s3 + $0x188] sm:$0xff]
      %v1034 = vld [vmem:[%s3 + $0x190] sm:$0xff]
      %v1035 = vld [vmem:[%s3 + $0x198] sm:$0xff]
      %v1036 = vld [vmem:[%s3 + $0x1a0] sm:$0xff]
      %v1037 = vld [vmem:[%s3 + $0x1a8] sm:$0xff]
      %v1038 = vld [vmem:[%s3 + $0x1b0] sm:$0xff]
      %v1039 = vld [vmem:[%s3 + $0x1b8] sm:$0xff]
      %v1040 = vld [vmem:[%s3 + $0x1c0] sm:$0xff]
      %v1041 = vld [vmem:[%s3 + $0x1c8] sm:$0xff]
      %v1042 = vld [vmem:[%s3 + $0x1d0] sm:$0xff]
      %v1043 = vld [vmem:[%s3 + $0x1d8] sm:$0xff]
      %v1044 = vld [vmem:[%s3 + $0x1e0] sm:$0xff]
      %v1045 = vld [vmem:[%s3 + $0x1e8] sm:$0xff]
      %v1046 = vld [vmem:[%s3 + $0x1f0] sm:$0xff]
      %v1047 = vld [vmem:[%s3 + $0x1f8] sm:$0xff]
      %v1048 = vld [vmem:[%s3 + $0x200] sm:$0xff]
      %v1049 = vld [vmem:[%s3 + $0x208] sm:$0xff]
      %v1050 = vld [vmem:[%s3 + $0x210] sm:$0xff]
      %v1051 = vld [vmem:[%s3 + $0x218] sm:$0xff]
      %v1052 = vld [vmem:[%s3 + $0x220] sm:$0xff]
      %v1053 = vld [vmem:[%s3 + $0x228] sm:$0xff]
      %v1054 = vld [vmem:[%s3 + $0x230] sm:$0xff]
      %v1055 = vld [vmem:[%s3 + $0x238] sm:$0xff]
      %v1056 = vld [vmem:[%s3 + $0x240] sm:$0xff]
      %v1057 = vld [vmem:[%s3 + $0x248] sm:$0xff]
      %v1058 = vld [vmem:[%s3 + $0x250] sm:$0xff]
      %v1059 = vld [vmem:[%s3 + $0x258] sm:$0xff]
      %v1060 = vld [vmem:[%s3 + $0x260] sm:$0xff]
      %v1061 = vld [vmem:[%s3 + $0x268] sm:$0xff]
      %v1062 = vld [vmem:[%s3 + $0x270] sm:$0xff]
      %v1063 = vld [vmem:[%s3 + $0x278] sm:$0xff]
      %v1144 = vunpack.c.l.b16 %v984
      %v1145 = vunpack.c.h.b16 %v984
      %v1146 = vunpack.c.l.b16 %v985
      %v1147 = vunpack.c.h.b16 %v985
      %v1148 = vunpack.c.l.b16 %v986
      %v1149 = vunpack.c.h.b16 %v986
      %v1150 = vunpack.c.l.b16 %v987
      %v1151 = vunpack.c.h.b16 %v987
      %v1152 = vunpack.c.l.b16 %v988
      %v1153 = vunpack.c.h.b16 %v988
      %v1154 = vunpack.c.l.b16 %v989
      %v1155 = vunpack.c.h.b16 %v989
      %v1156 = vunpack.c.l.b16 %v990
      %v1157 = vunpack.c.h.b16 %v990
      %v1158 = vunpack.c.l.b16 %v991
      %v1159 = vunpack.c.h.b16 %v991
      %v1160 = vunpack.c.l.b16 %v992
      %v1161 = vunpack.c.h.b16 %v992
      %v1162 = vunpack.c.l.b16 %v993
      %v1163 = vunpack.c.h.b16 %v993
      %v1164 = vunpack.c.l.b16 %v994
      %v1165 = vunpack.c.h.b16 %v994
      %v1166 = vunpack.c.l.b16 %v995
      %v1167 = vunpack.c.h.b16 %v995
      %v1168 = vunpack.c.l.b16 %v996
      %v1169 = vunpack.c.h.b16 %v996
      %v1170 = vunpack.c.l.b16 %v997
      %v1171 = vunpack.c.h.b16 %v997
      %v1172 = vunpack.c.l.b16 %v998
      %v1173 = vunpack.c.h.b16 %v998
      %v1174 = vunpack.c.l.b16 %v999
      %v1175 = vunpack.c.h.b16 %v999
      %v1176 = vunpack.c.l.b16 %v1000
      %v1177 = vunpack.c.h.b16 %v1000
      %v1178 = vunpack.c.l.b16 %v1001
      %v1179 = vunpack.c.h.b16 %v1001
      %v1180 = vunpack.c.l.b16 %v1002
      %v1181 = vunpack.c.h.b16 %v1002
      %v1182 = vunpack.c.l.b16 %v1003
      %v1183 = vunpack.c.h.b16 %v1003
      %v1184 = vunpack.c.l.b16 %v1004
      %v1185 = vunpack.c.h.b16 %v1004
      %v1186 = vunpack.c.l.b16 %v1005
      %v1187 = vunpack.c.h.b16 %v1005
      %v1188 = vunpack.c.l.b16 %v1006
      %v1189 = vunpack.c.h.b16 %v1006
      %v1190 = vunpack.c.l.b16 %v1007
      %v1191 = vunpack.c.h.b16 %v1007
      %v1192 = vunpack.c.l.b16 %v1008
      %v1193 = vunpack.c.h.b16 %v1008
      %v1194 = vunpack.c.l.b16 %v1009
      %v1195 = vunpack.c.h.b16 %v1009
      %v1196 = vunpack.c.l.b16 %v1010
      %v1197 = vunpack.c.h.b16 %v1010
      %v1198 = vunpack.c.l.b16 %v1011
      %v1199 = vunpack.c.h.b16 %v1011
      %v1200 = vunpack.c.l.b16 %v1012
      %v1201 = vunpack.c.h.b16 %v1012
      %v1202 = vunpack.c.l.b16 %v1013
      %v1203 = vunpack.c.h.b16 %v1013
      %v1204 = vunpack.c.l.b16 %v1014
      %v1205 = vunpack.c.h.b16 %v1014
      %v1206 = vunpack.c.l.b16 %v1015
      %v1207 = vunpack.c.h.b16 %v1015
      %v1208 = vunpack.c.l.b16 %v1016
      %v1209 = vunpack.c.h.b16 %v1016
      %v1210 = vunpack.c.l.b16 %v1017
      %v1211 = vunpack.c.h.b16 %v1017
      %v1212 = vunpack.c.l.b16 %v1018
      %v1213 = vunpack.c.h.b16 %v1018
      %v1214 = vunpack.c.l.b16 %v1019
      %v1215 = vunpack.c.h.b16 %v1019
      %v1216 = vunpack.c.l.b16 %v1020
      %v1217 = vunpack.c.h.b16 %v1020
      %v1218 = vunpack.c.l.b16 %v1021
      %v1219 = vunpack.c.h.b16 %v1021
      %v1220 = vunpack.c.l.b16 %v1022
      %v1221 = vunpack.c.h.b16 %v1022
      %v1222 = vunpack.c.l.b16 %v1023
      %v1223 = vunpack.c.h.b16 %v1023
      %v1224 = vunpack.c.l.b16 %v1024
      %v1225 = vunpack.c.h.b16 %v1024
      %v1226 = vunpack.c.l.b16 %v1025
      %v1227 = vunpack.c.h.b16 %v1025
      %v1228 = vunpack.c.l.b16 %v1026
      %v1229 = vunpack.c.h.b16 %v1026
      %v1230 = vunpack.c.l.b16 %v1027
      %v1231 = vunpack.c.h.b16 %v1027
      %v1232 = vunpack.c.l.b16 %v1028
      %v1233 = vunpack.c.h.b16 %v1028
      %v1234 = vunpack.c.l.b16 %v1029
      %v1235 = vunpack.c.h.b16 %v1029
      %v1236 = vunpack.c.l.b16 %v1030
      %v1237 = vunpack.c.h.b16 %v1030
      %v1238 = vunpack.c.l.b16 %v1031
      %v1239 = vunpack.c.h.b16 %v1031
      %v1240 = vunpack.c.l.b16 %v1032
      %v1241 = vunpack.c.h.b16 %v1032
      %v1242 = vunpack.c.l.b16 %v1033
      %v1243 = vunpack.c.h.b16 %v1033
      %v1244 = vunpack.c.l.b16 %v1034
      %v1245 = vunpack.c.h.b16 %v1034
      %v1246 = vunpack.c.l.b16 %v1035
      %v1247 = vunpack.c.h.b16 %v1035
      %v1248 = vunpack.c.l.b16 %v1036
      %v1249 = vunpack.c.h.b16 %v1036
      %v1250 = vunpack.c.l.b16 %v1037
      %v1251 = vunpack.c.h.b16 %v1037
      %v1252 = vunpack.c.l.b16 %v1038
      %v1253 = vunpack.c.h.b16 %v1038
      %v1254 = vunpack.c.l.b16 %v1039
      %v1255 = vunpack.c.h.b16 %v1039
      %v1256 = vunpack.c.l.b16 %v1040
      %v1257 = vunpack.c.h.b16 %v1040
      %v1258 = vunpack.c.l.b16 %v1041
      %v1259 = vunpack.c.h.b16 %v1041
      %v1260 = vunpack.c.l.b16 %v1042
      %v1261 = vunpack.c.h.b16 %v1042
      %v1262 = vunpack.c.l.b16 %v1043
      %v1263 = vunpack.c.h.b16 %v1043
      %v1264 = vunpack.c.l.b16 %v1044
      %v1265 = vunpack.c.h.b16 %v1044
      %v1266 = vunpack.c.l.b16 %v1045
      %v1267 = vunpack.c.h.b16 %v1045
      %v1268 = vunpack.c.l.b16 %v1046
      %v1269 = vunpack.c.h.b16 %v1046
      %v1270 = vunpack.c.l.b16 %v1047
      %v1271 = vunpack.c.h.b16 %v1047
      %v1272 = vunpack.c.l.b16 %v1048
      %v1273 = vunpack.c.h.b16 %v1048
      %v1274 = vunpack.c.l.b16 %v1049
      %v1275 = vunpack.c.h.b16 %v1049
      %v1276 = vunpack.c.l.b16 %v1050
      %v1277 = vunpack.c.h.b16 %v1050
      %v1278 = vunpack.c.l.b16 %v1051
      %v1279 = vunpack.c.h.b16 %v1051
      %v1280 = vunpack.c.l.b16 %v1052
      %v1281 = vunpack.c.h.b16 %v1052
      %v1282 = vunpack.c.l.b16 %v1053
      %v1283 = vunpack.c.h.b16 %v1053
      %v1284 = vunpack.c.l.b16 %v1054
      %v1285 = vunpack.c.h.b16 %v1054
      %v1286 = vunpack.c.l.b16 %v1055
      %v1287 = vunpack.c.h.b16 %v1055
      %v1288 = vunpack.c.l.b16 %v1056
      %v1289 = vunpack.c.h.b16 %v1056
      %v1290 = vunpack.c.l.b16 %v1057
      %v1291 = vunpack.c.h.b16 %v1057
      %v1292 = vunpack.c.l.b16 %v1058
      %v1293 = vunpack.c.h.b16 %v1058
      %v1294 = vunpack.c.l.b16 %v1059
      %v1295 = vunpack.c.h.b16 %v1059
      %v1296 = vunpack.c.l.b16 %v1060
      %v1297 = vunpack.c.h.b16 %v1060
      %v1298 = vunpack.c.l.b16 %v1061
      %v1299 = vunpack.c.h.b16 %v1061
      %v1300 = vunpack.c.l.b16 %v1062
      %v1301 = vunpack.c.h.b16 %v1062
      %v1302 = vunpack.c.l.b16 %v1063
      %v1303 = vunpack.c.h.b16 %v1063
      %v1304 = vpack.c.b16 %v1146, %v1144
      %v1305 = vpack.c.b16 %v1147, %v1145
      %v1306 = vpack.c.b16 %v1150, %v1148
      %v1307 = vpack.c.b16 %v1151, %v1149
      %v1308 = vpack.c.b16 %v1154, %v1152
      %v1309 = vpack.c.b16 %v1155, %v1153
      %v1310 = vpack.c.b16 %v1158, %v1156
      %v1311 = vpack.c.b16 %v1159, %v1157
      %v1312 = vpack.c.b16 %v1162, %v1160
      %v1313 = vpack.c.b16 %v1163, %v1161
      %v1314 = vpack.c.b16 %v1166, %v1164
      %v1315 = vpack.c.b16 %v1167, %v1165
      %v1316 = vpack.c.b16 %v1170, %v1168
      %v1317 = vpack.c.b16 %v1171, %v1169
      %v1318 = vpack.c.b16 %v1174, %v1172
      %v1319 = vpack.c.b16 %v1175, %v1173
      %v1320 = vpack.c.b16 %v1178, %v1176
      %v1321 = vpack.c.b16 %v1179, %v1177
      %v1322 = vpack.c.b16 %v1182, %v1180
      %v1323 = vpack.c.b16 %v1183, %v1181
      %v1324 = vpack.c.b16 %v1186, %v1184
      %v1325 = vpack.c.b16 %v1187, %v1185
      %v1326 = vpack.c.b16 %v1190, %v1188
      %v1327 = vpack.c.b16 %v1191, %v1189
      %v1328 = vpack.c.b16 %v1194, %v1192
      %v1329 = vpack.c.b16 %v1195, %v1193
      %v1330 = vpack.c.b16 %v1198, %v1196
      %v1331 = vpack.c.b16 %v1199, %v1197
      %v1332 = vpack.c.b16 %v1202, %v1200
      %v1333 = vpack.c.b16 %v1203, %v1201
      %v1334 = vpack.c.b16 %v1206, %v1204
      %v1335 = vpack.c.b16 %v1207, %v1205
      %v1336 = vpack.c.b16 %v1210, %v1208
      %v1337 = vpack.c.b16 %v1211, %v1209
      %v1338 = vpack.c.b16 %v1214, %v1212
      %v1339 = vpack.c.b16 %v1215, %v1213
      %v1340 = vpack.c.b16 %v1218, %v1216
      %v1341 = vpack.c.b16 %v1219, %v1217
      %v1342 = vpack.c.b16 %v1222, %v1220
      %v1343 = vpack.c.b16 %v1223, %v1221
      %v1344 = vpack.c.b16 %v1226, %v1224
      %v1345 = vpack.c.b16 %v1227, %v1225
      %v1346 = vpack.c.b16 %v1230, %v1228
      %v1347 = vpack.c.b16 %v1231, %v1229
      %v1348 = vpack.c.b16 %v1234, %v1232
      %v1349 = vpack.c.b16 %v1235, %v1233
      %v1350 = vpack.c.b16 %v1238, %v1236
      %v1351 = vpack.c.b16 %v1239, %v1237
      %v1352 = vpack.c.b16 %v1242, %v1240
      %v1353 = vpack.c.b16 %v1243, %v1241
      %v1354 = vpack.c.b16 %v1246, %v1244
      %v1355 = vpack.c.b16 %v1247, %v1245
      %v1356 = vpack.c.b16 %v1250, %v1248
      %v1357 = vpack.c.b16 %v1251, %v1249
      %v1358 = vpack.c.b16 %v1254, %v1252
      %v1359 = vpack.c.b16 %v1255, %v1253
      %v1360 = vpack.c.b16 %v1258, %v1256
      %v1361 = vpack.c.b16 %v1259, %v1257
      %v1362 = vpack.c.b16 %v1262, %v1260
      %v1363 = vpack.c.b16 %v1263, %v1261
      %v1364 = vpack.c.b16 %v1266, %v1264
      %v1365 = vpack.c.b16 %v1267, %v1265
      %v1366 = vpack.c.b16 %v1270, %v1268
      %v1367 = vpack.c.b16 %v1271, %v1269
      %v1368 = vpack.c.b16 %v1274, %v1272
      %v1369 = vpack.c.b16 %v1275, %v1273
      %v1370 = vpack.c.b16 %v1278, %v1276
      %v1371 = vpack.c.b16 %v1279, %v1277
      %v1372 = vpack.c.b16 %v1282, %v1280
      %v1373 = vpack.c.b16 %v1283, %v1281
      %v1374 = vpack.c.b16 %v1286, %v1284
      %v1375 = vpack.c.b16 %v1287, %v1285
      %v1376 = vpack.c.b16 %v1290, %v1288
      %v1377 = vpack.c.b16 %v1291, %v1289
      %v1378 = vpack.c.b16 %v1294, %v1292
      %v1379 = vpack.c.b16 %v1295, %v1293
      %v1380 = vpack.c.b16 %v1298, %v1296
      %v1381 = vpack.c.b16 %v1299, %v1297
      %v1382 = vpack.c.b16 %v1302, %v1300
      %v1383 = vpack.c.b16 %v1303, %v1301
      %1464 = vmatprep.subr.bf16.mxu0 %v1319
      %1465 = vmatpush1.bf16.msra.mxu0 %v1318
      %1466 = vmatprep.subr.bf16.mxu0 %v1317
      %1467 = vmatpush1.bf16.msra.mxu0 %v1316
      %1468 = vmatprep.subr.bf16.mxu0 %v1315
      %1469 = vmatpush1.bf16.msra.mxu0 %v1314
      %1470 = vmatprep.subr.bf16.mxu0 %v1313
      %1471 = vmatpush1.bf16.msra.mxu0 %v1312
      %1472 = vmatprep.subr.bf16.mxu0 %v1311
      %1473 = vmatpush1.bf16.msra.mxu0 %v1310
      %1474 = vmatprep.subr.bf16.mxu0 %v1309
      %1475 = vmatpush1.bf16.msra.mxu0 %v1308
      %1476 = vmatprep.subr.bf16.mxu0 %v1307
      %1477 = vmatpush1.bf16.msra.mxu0 %v1306
      %1478 = vmatprep.subr.bf16.mxu0 %v1305
      %1479 = vmatpush1.bf16.msra.mxu0 %v1304
      %1480 = vmatprep.subr.bf16.mxu0 %v1335
      %1481 = vmatpush2.bf16.msra.mxu0 %v1334
      %1482 = vmatprep.subr.bf16.mxu0 %v1333
      %1483 = vmatpush2.bf16.msra.mxu0 %v1332
      %1484 = vmatprep.subr.bf16.mxu0 %v1331
      %1485 = vmatpush2.bf16.msra.mxu0 %v1330
      %1486 = vmatprep.subr.bf16.mxu0 %v1329
      %1487 = vmatpush2.bf16.msra.mxu0 %v1328
      %1488 = vmatprep.subr.bf16.mxu0 %v1327
      %1489 = vmatpush2.bf16.msra.mxu0 %v1326
      %1490 = vmatprep.subr.bf16.mxu0 %v1325
      %1491 = vmatpush2.bf16.msra.mxu0 %v1324
      %1492 = vmatprep.subr.bf16.mxu0 %v1323
      %1493 = vmatpush2.bf16.msra.mxu0 %v1322
      %1494 = vmatprep.subr.bf16.mxu0 %v1321
      %1495 = vmatpush2.bf16.msra.mxu0 %v1320
      %1496 = vmatprep.mubr.bf16.mxu0 %v980
      %1497 = vmatmul.mubr.bf16.gmra.mxu0 %v979
      %v1498 = vpop.f32.mrf.mxu0
      %v1499 = vadd.f32 0.0, %v1498
      %v1500 = vpop.f32.mrf.mxu0
      %v1501 = vadd.f32 0.0, %v1500
      %v1502 = vpop.f32.mrf.mxu0
      %v1503 = vadd.f32 0.0, %v1502
      %v1504 = vpop.f32.mrf.mxu0
      %v1505 = vadd.f32 0.0, %v1504
      %1506 = vdwg.mxu0
      %1507 = vmatprep.subr.bf16.mxu0 %v1351
      %1508 = vmatpush1.bf16.msra.mxu0 %v1350
      %1509 = vmatprep.subr.bf16.mxu0 %v1349
      %1510 = vmatpush1.bf16.msra.mxu0 %v1348
      %1511 = vmatprep.subr.bf16.mxu0 %v1347
      %1512 = vmatpush1.bf16.msra.mxu0 %v1346
      %1513 = vmatprep.subr.bf16.mxu0 %v1345
      %1514 = vmatpush1.bf16.msra.mxu0 %v1344
      %1515 = vmatprep.subr.bf16.mxu0 %v1343
      %1516 = vmatpush1.bf16.msra.mxu0 %v1342
      %1517 = vmatprep.subr.bf16.mxu0 %v1341
      %1518 = vmatpush1.bf16.msra.mxu0 %v1340
      %1519 = vmatprep.subr.bf16.mxu0 %v1339
      %1520 = vmatpush1.bf16.msra.mxu0 %v1338
      %1521 = vmatprep.subr.bf16.mxu0 %v1337
      %1522 = vmatpush1.bf16.msra.mxu0 %v1336
      %1523 = vmatprep.subr.bf16.mxu0 %v1367
      %1524 = vmatpush2.bf16.msra.mxu0 %v1366
      %1525 = vmatprep.subr.bf16.mxu0 %v1365
      %1526 = vmatpush2.bf16.msra.mxu0 %v1364
      %1527 = vmatprep.subr.bf16.mxu0 %v1363
      %1528 = vmatpush2.bf16.msra.mxu0 %v1362
      %1529 = vmatprep.subr.bf16.mxu0 %v1361
      %1530 = vmatpush2.bf16.msra.mxu0 %v1360
      %1531 = vmatprep.subr.bf16.mxu0 %v1359
      %1532 = vmatpush2.bf16.msra.mxu0 %v1358
      %1533 = vmatprep.subr.bf16.mxu0 %v1357
      %1534 = vmatpush2.bf16.msra.mxu0 %v1356
      %1535 = vmatprep.subr.bf16.mxu0 %v1355
      %1536 = vmatpush2.bf16.msra.mxu0 %v1354
      %1537 = vmatprep.subr.bf16.mxu0 %v1353
      %1538 = vmatpush2.bf16.msra.mxu0 %v1352
      %1539 = vmatprep.mubr.bf16.mxu0 %v982
      %1540 = vmatmul.mubr.bf16.gmra.mxu0 %v981
      %v1541 = vpop.f32.mrf.mxu0
      %v1542 = vadd.f32 %v1499, %v1541
      %v1543 = vpop.f32.mrf.mxu0
      %v1544 = vadd.f32 %v1501, %v1543
      %v1545 = vpop.f32.mrf.mxu0
      %v1546 = vadd.f32 %v1503, %v1545
      %v1547 = vpop.f32.mrf.mxu0
      %v1548 = vadd.f32 %v1505, %v1547
      %1549 = vdwg.mxu0
      %1550 = vmatprep.subr.bf16.mxu0 %v1383
      %1551 = vmatpush1.bf16.msra.mxu0 %v1382
      %1552 = vmatprep.subr.bf16.mxu0 %v1381
      %1553 = vmatpush1.bf16.msra.mxu0 %v1380
      %1554 = vmatprep.subr.bf16.mxu0 %v1379
      %1555 = vmatpush1.bf16.msra.mxu0 %v1378
      %1556 = vmatprep.subr.bf16.mxu0 %v1377
      %1557 = vmatpush1.bf16.msra.mxu0 %v1376
      %1558 = vmatprep.subr.bf16.mxu0 %v1375
      %1559 = vmatpush1.bf16.msra.mxu0 %v1374
      %1560 = vmatprep.subr.bf16.mxu0 %v1373
      %1561 = vmatpush1.bf16.msra.mxu0 %v1372
      %1562 = vmatprep.subr.bf16.mxu0 %v1371
      %1563 = vmatpush1.bf16.msra.mxu0 %v1370
      %1564 = vmatprep.subr.bf16.mxu0 %v1369
      %1565 = vmatpush1.bf16.msra.mxu0 %v1368
      %1566 = vmatprep.subr.bf16.mxu0 0
      %1567 = vmatpush2.bf16.msra.mxu0 0
      %1568 = vmatprep.subr.bf16.mxu0 0
      %1569 = vmatpush2.bf16.msra.mxu0 0
      %1570 = vmatprep.subr.bf16.mxu0 0
      %1571 = vmatpush2.bf16.msra.mxu0 0
      %1572 = vmatprep.subr.bf16.mxu0 0
      %1573 = vmatpush2.bf16.msra.mxu0 0
      %1574 = vmatprep.subr.bf16.mxu0 0
      %1575 = vmatpush2.bf16.msra.mxu0 0
      %1576 = vmatprep.subr.bf16.mxu0 0
      %1577 = vmatpush2.bf16.msra.mxu0 0
      %1578 = vmatprep.subr.bf16.mxu0 0
      %1579 = vmatpush2.bf16.msra.mxu0 0
      %1580 = vmatprep.subr.bf16.mxu0 0
      %1581 = vmatpush2.bf16.msra.mxu0 0
      %1582 = vmatprep.mubr.bf16.mxu0 0
      %1583 = vmatmul.mubr.bf16.gmra.mxu0 %v983
      %v1584 = vpop.f32.mrf.mxu0
      %v1585 = vadd.f32 %v1542, %v1584
      %v1586 = vpop.f32.mrf.mxu0
      %v1587 = vadd.f32 %v1544, %v1586
      %v1588 = vpop.f32.mrf.mxu0
      %v1589 = vadd.f32 %v1546, %v1588
      %v1590 = vpop.f32.mrf.mxu0
      %v1591 = vadd.f32 %v1548, %v1590
      %1592 = vdwg.mxu0
      %v1593 = vmax.f32 %v1585, %v1587
      %v1594 = vmax.f32 %v1589, %v1591
      %v1595 = vld [vmem:[%s4] sm:$0x1]
      %v1597 = vlaneseq
      %v1598 = vshrl.u32 %v1597, 7
      %v1599 = vsub.s32 0, %v1598
      %v1600 = vrot.slane %v1595, %v1599
      %v1602 = vadd.f32 %v1593, %v1600
      %v1603 = vadd.f32 %v1594, %v1600
      %v1604 = vpack.c.bf16 %v1603, %v1602
      %v1605 = vld [vmem:[%s5] sm:$0x7]
      %vm1606 = vcmask 130048
      %v1608 = vsel %vm1606, %v1605, 0
      %1610 = vmatprep.subr.bf16.mxu0 0
      %1611 = vmatpush1.bf16.msra.mxu0 0
      %1612 = vmatprep.subr.bf16.mxu0 0
      %1613 = vmatpush1.bf16.msra.mxu0 0
      %1614 = vmatprep.subr.bf16.mxu0 0
      %1615 = vmatpush1.bf16.msra.mxu0 0
      %1616 = vmatprep.subr.bf16.mxu0 0
      %1617 = vmatpush1.bf16.msra.mxu0 0
      %1618 = vmatprep.subr.bf16.mxu0 0
      %1619 = vmatpush1.bf16.msra.mxu0 0
      %1620 = vmatprep.subr.bf16.mxu0 0
      %1621 = vmatpush1.bf16.msra.mxu0 0
      %1622 = vmatprep.subr.bf16.mxu0 0
      %1623 = vmatpush1.bf16.msra.mxu0 0
      %1624 = vmatprep.subr.bf16.mxu0 0
      %1625 = vmatpush1.bf16.msra.mxu0 %v1604
      %1626 = vmatprep.subr.bf16.mxu0 0
      %1627 = vmatpush2.bf16.msra.mxu0 0
      %1628 = vmatprep.subr.bf16.mxu0 0
      %1629 = vmatpush2.bf16.msra.mxu0 0
      %1630 = vmatprep.subr.bf16.mxu0 0
      %1631 = vmatpush2.bf16.msra.mxu0 0
      %1632 = vmatprep.subr.bf16.mxu0 0
      %1633 = vmatpush2.bf16.msra.mxu0 0
      %1634 = vmatprep.subr.bf16.mxu0 0
      %1635 = vmatpush2.bf16.msra.mxu0 0
      %1636 = vmatprep.subr.bf16.mxu0 0
      %1637 = vmatpush2.bf16.msra.mxu0 0
      %1638 = vmatprep.subr.bf16.mxu0 0
      %1639 = vmatpush2.bf16.msra.mxu0 0
      %1640 = vmatprep.subr.bf16.mxu0 0
      %1641 = vmatpush2.bf16.msra.mxu0 0
      %1642 = vmatprep.mubr.bf16.mxu0 0
      %1643 = vmatmul.mubr.bf16.gmra.mxu0 %v1608
      %v1644 = vpop.f32.mrf.mxu0
      %v1645 = vadd.f32 0.0, %v1644
      %v1646 = vpop.f32.mrf.mxu0
      %v1647 = vpop.f32.mrf.mxu0
      %v1648 = vpop.f32.mrf.mxu0
      %1649 = vdwg.mxu0
      %v1650 = vld [vmem:[%s6] sm:$0x7]
      %v1652 = vsel %vm1606, %v1650, 0
      %1654 = vmatprep.subr.bf16.mxu0 0
      %1655 = vmatpush1.bf16.msra.mxu0 0
      %1656 = vmatprep.subr.bf16.mxu0 0
      %1657 = vmatpush1.bf16.msra.mxu0 0
      %1658 = vmatprep.subr.bf16.mxu0 0
      %1659 = vmatpush1.bf16.msra.mxu0 0
      %1660 = vmatprep.subr.bf16.mxu0 0
      %1661 = vmatpush1.bf16.msra.mxu0 0
      %1662 = vmatprep.subr.bf16.mxu0 0
      %1663 = vmatpush1.bf16.msra.mxu0 0
      %1664 = vmatprep.subr.bf16.mxu0 0
      %1665 = vmatpush1.bf16.msra.mxu0 0
      %1666 = vmatprep.subr.bf16.mxu0 0
      %1667 = vmatpush1.bf16.msra.mxu0 0
      %1668 = vmatprep.subr.bf16.mxu0 0
      %1669 = vmatpush1.bf16.msra.mxu0 %v1604
      %1670 = vmatprep.subr.bf16.mxu0 0
      %1671 = vmatpush2.bf16.msra.mxu0 0
      %1672 = vmatprep.subr.bf16.mxu0 0
      %1673 = vmatpush2.bf16.msra.mxu0 0
      %1674 = vmatprep.subr.bf16.mxu0 0
      %1675 = vmatpush2.bf16.msra.mxu0 0
      %1676 = vmatprep.subr.bf16.mxu0 0
      %1677 = vmatpush2.bf16.msra.mxu0 0
      %1678 = vmatprep.subr.bf16.mxu0 0
      %1679 = vmatpush2.bf16.msra.mxu0 0
      %1680 = vmatprep.subr.bf16.mxu0 0
      %1681 = vmatpush2.bf16.msra.mxu0 0
      %1682 = vmatprep.subr.bf16.mxu0 0
      %1683 = vmatpush2.bf16.msra.mxu0 0
      %1684 = vmatprep.subr.bf16.mxu0 0
      %1685 = vmatpush2.bf16.msra.mxu0 0
      %1686 = vmatprep.mubr.bf16.mxu0 0
      %1687 = vmatmul.mubr.bf16.gmra.mxu0 %v1652
      %v1688 = vpop.f32.mrf.mxu0
      %v1689 = vadd.f32 0.0, %v1688
      %v1690 = vpop.f32.mrf.mxu0
      %v1691 = vpop.f32.mrf.mxu0
      %v1692 = vpop.f32.mrf.mxu0
      %1693 = vdwg.mxu0
      %v1694 = vmax.f32 %v1645, %v1689
      %v1695 = vmax.f32 %v1694, 0.0
      %v1697 = vrot.slane %v1695, 1
      %v1699 = vrot.slane %v1695, 2
      %v1701 = vrot.slane %v1695, 3
      %v1703 = vrot.slane %v1695, 4
      %vm1705 = vcmask 1040384
      %v1706 = vsel %vm1705, %v1695, 0.0
      %v1707 = vsel %vm1705, %v1697, 0.0
      %v1708 = vsel %vm1705, %v1699, 0.0
      %v1709 = vsel %vm1705, %v1701, 0.0
      %v1710 = vsel %vm1705, %v1703, 0.0
      %v1711 = vpack.c.bf16 %v1706, %v1706
      %v1712 = vpack.c.bf16 %v1707, %v1707
      %v1713 = vpack.c.bf16 %v1708, %v1708
      %v1714 = vpack.c.bf16 %v1709, %v1709
      %v1715 = vpack.c.bf16 %v1710, %v1710
      %v1716 = vld [vmem:[%s7] sm:$0xf]
      %v1717 = vld [vmem:[%s7 + $0x4] sm:$0xf]
      %v1718 = vld [vmem:[%s7 + $0x8] sm:$0xf]
      %v1719 = vld [vmem:[%s7 + $0xc] sm:$0xf]
      %v1720 = vld [vmem:[%s7 + $0x10] sm:$0xf]
      %v1721 = vld [vmem:[%s7 + $0x14] sm:$0xf]
      %v1722 = vld [vmem:[%s7 + $0x18] sm:$0xf]
      %v1723 = vld [vmem:[%s7 + $0x1c] sm:$0xf]
      %v1724 = vld [vmem:[%s7 + $0x20] sm:$0xf]
      %v1725 = vld [vmem:[%s7 + $0x24] sm:$0xf]
      %v1726 = vld [vmem:[%s7 + $0x28] sm:$0xf]
      %v1727 = vld [vmem:[%s7 + $0x2c] sm:$0xf]
      %v1728 = vld [vmem:[%s7 + $0x30] sm:$0xf]
      %v1729 = vld [vmem:[%s7 + $0x34] sm:$0xf]
      %v1730 = vld [vmem:[%s7 + $0x38] sm:$0xf]
      %v1731 = vld [vmem:[%s7 + $0x3c] sm:$0xf]
      %v1732 = vld [vmem:[%s7 + $0x40] sm:$0xf]
      %v1733 = vld [vmem:[%s7 + $0x44] sm:$0xf]
      %v1734 = vld [vmem:[%s7 + $0x48] sm:$0xf]
      %v1735 = vld [vmem:[%s7 + $0x4c] sm:$0xf]
      %v1736 = vld [vmem:[%s7 + $0x50] sm:$0xf]
      %v1737 = vld [vmem:[%s7 + $0x54] sm:$0xf]
      %v1738 = vld [vmem:[%s7 + $0x58] sm:$0xf]
      %v1739 = vld [vmem:[%s7 + $0x5c] sm:$0xf]
      %v1740 = vld [vmem:[%s7 + $0x60] sm:$0xf]
      %v1741 = vld [vmem:[%s7 + $0x64] sm:$0xf]
      %v1742 = vld [vmem:[%s7 + $0x68] sm:$0xf]
      %v1743 = vld [vmem:[%s7 + $0x6c] sm:$0xf]
      %v1744 = vld [vmem:[%s7 + $0x70] sm:$0xf]
      %v1745 = vld [vmem:[%s7 + $0x74] sm:$0xf]
      %v1746 = vld [vmem:[%s7 + $0x78] sm:$0xf]
      %v1747 = vld [vmem:[%s7 + $0x7c] sm:$0xf]
      %v1748 = vld [vmem:[%s7 + $0x80] sm:$0xf]
      %v1749 = vld [vmem:[%s7 + $0x84] sm:$0xf]
      %v1750 = vld [vmem:[%s7 + $0x88] sm:$0xf]
      %v1751 = vld [vmem:[%s7 + $0x8c] sm:$0xf]
      %v1752 = vld [vmem:[%s7 + $0x90] sm:$0xf]
      %v1753 = vld [vmem:[%s7 + $0x94] sm:$0xf]
      %v1754 = vld [vmem:[%s7 + $0x98] sm:$0xf]
      %v1755 = vld [vmem:[%s7 + $0x9c] sm:$0xf]
      %v1756 = vld [vmem:[%s7 + $0xa0] sm:$0xf]
      %v1757 = vld [vmem:[%s7 + $0xa4] sm:$0xf]
      %v1758 = vld [vmem:[%s7 + $0xa8] sm:$0xf]
      %v1759 = vld [vmem:[%s7 + $0xac] sm:$0xf]
      %v1760 = vld [vmem:[%s7 + $0xb0] sm:$0xf]
      %v1761 = vld [vmem:[%s7 + $0xb4] sm:$0xf]
      %v1762 = vld [vmem:[%s7 + $0xb8] sm:$0xf]
      %v1763 = vld [vmem:[%s7 + $0xbc] sm:$0xf]
      %v1764 = vld [vmem:[%s7 + $0xc0] sm:$0xf]
      %v1765 = vld [vmem:[%s7 + $0xc4] sm:$0xf]
      %v1766 = vld [vmem:[%s7 + $0xc8] sm:$0xf]
      %v1767 = vld [vmem:[%s7 + $0xcc] sm:$0xf]
      %v1768 = vld [vmem:[%s7 + $0xd0] sm:$0xf]
      %v1769 = vld [vmem:[%s7 + $0xd4] sm:$0xf]
      %v1770 = vld [vmem:[%s7 + $0xd8] sm:$0xf]
      %v1771 = vld [vmem:[%s7 + $0xdc] sm:$0xf]
      %v1772 = vld [vmem:[%s7 + $0xe0] sm:$0xf]
      %v1773 = vld [vmem:[%s7 + $0xe4] sm:$0xf]
      %v1774 = vld [vmem:[%s7 + $0xe8] sm:$0xf]
      %v1775 = vld [vmem:[%s7 + $0xec] sm:$0xf]
      %v1776 = vld [vmem:[%s7 + $0xf0] sm:$0xf]
      %v1777 = vld [vmem:[%s7 + $0xf4] sm:$0xf]
      %v1778 = vld [vmem:[%s7 + $0xf8] sm:$0xf]
      %v1779 = vld [vmem:[%s7 + $0xfc] sm:$0xf]
      %v1780 = vld [vmem:[%s7 + $0x100] sm:$0xf]
      %v1781 = vld [vmem:[%s7 + $0x104] sm:$0xf]
      %v1782 = vld [vmem:[%s7 + $0x108] sm:$0xf]
      %v1783 = vld [vmem:[%s7 + $0x10c] sm:$0xf]
      %v1784 = vld [vmem:[%s7 + $0x110] sm:$0xf]
      %v1785 = vld [vmem:[%s7 + $0x114] sm:$0xf]
      %v1786 = vld [vmem:[%s7 + $0x118] sm:$0xf]
      %v1787 = vld [vmem:[%s7 + $0x11c] sm:$0xf]
      %v1788 = vld [vmem:[%s7 + $0x120] sm:$0xf]
      %v1789 = vld [vmem:[%s7 + $0x124] sm:$0xf]
      %v1790 = vld [vmem:[%s7 + $0x128] sm:$0xf]
      %v1791 = vld [vmem:[%s7 + $0x12c] sm:$0xf]
      %v1792 = vld [vmem:[%s7 + $0x130] sm:$0xf]
      %v1793 = vld [vmem:[%s7 + $0x134] sm:$0xf]
      %v1794 = vld [vmem:[%s7 + $0x138] sm:$0xf]
      %v1795 = vld [vmem:[%s7 + $0x13c] sm:$0xf]
      %v1796 = vld [vmem:[%s8] sm:$0x1]
      %v1798 = vlaneseq
      %v1799 = vshrl.u32 %v1798, 7
      %v1800 = vsub.s32 0, %v1799
      %v1801 = vrot.slane %v1796, %v1800
      %v1883 = vunpack.c.l.b16 %v1716
      %v1884 = vunpack.c.l.b16 %v1717
      %v1885 = vunpack.c.l.b16 %v1718
      %v1886 = vunpack.c.l.b16 %v1719
      %v1887 = vunpack.c.l.b16 %v1720
      %v1888 = vunpack.c.l.b16 %v1721
      %v1889 = vunpack.c.l.b16 %v1722
      %v1890 = vunpack.c.l.b16 %v1723
      %v1891 = vunpack.c.l.b16 %v1724
      %v1892 = vunpack.c.l.b16 %v1725
      %v1893 = vunpack.c.l.b16 %v1726
      %v1894 = vunpack.c.l.b16 %v1727
      %v1895 = vunpack.c.l.b16 %v1728
      %v1896 = vunpack.c.l.b16 %v1729
      %v1897 = vunpack.c.l.b16 %v1730
      %v1898 = vunpack.c.l.b16 %v1731
      %v1899 = vunpack.c.l.b16 %v1732
      %v1900 = vunpack.c.l.b16 %v1733
      %v1901 = vunpack.c.l.b16 %v1734
      %v1902 = vunpack.c.l.b16 %v1735
      %v1903 = vunpack.c.l.b16 %v1736
      %v1904 = vunpack.c.l.b16 %v1737
      %v1905 = vunpack.c.l.b16 %v1738
      %v1906 = vunpack.c.l.b16 %v1739
      %v1907 = vunpack.c.l.b16 %v1740
      %v1908 = vunpack.c.l.b16 %v1741
      %v1909 = vunpack.c.l.b16 %v1742
      %v1910 = vunpack.c.l.b16 %v1743
      %v1911 = vunpack.c.l.b16 %v1744
      %v1912 = vunpack.c.l.b16 %v1745
      %v1913 = vunpack.c.l.b16 %v1746
      %v1914 = vunpack.c.l.b16 %v1747
      %v1915 = vunpack.c.l.b16 %v1748
      %v1916 = vunpack.c.l.b16 %v1749
      %v1917 = vunpack.c.l.b16 %v1750
      %v1918 = vunpack.c.l.b16 %v1751
      %v1919 = vunpack.c.l.b16 %v1752
      %v1920 = vunpack.c.l.b16 %v1753
      %v1921 = vunpack.c.l.b16 %v1754
      %v1922 = vunpack.c.l.b16 %v1755
      %v1923 = vunpack.c.l.b16 %v1756
      %v1924 = vunpack.c.l.b16 %v1757
      %v1925 = vunpack.c.l.b16 %v1758
      %v1926 = vunpack.c.l.b16 %v1759
      %v1927 = vunpack.c.l.b16 %v1760
      %v1928 = vunpack.c.l.b16 %v1761
      %v1929 = vunpack.c.l.b16 %v1762
      %v1930 = vunpack.c.l.b16 %v1763
      %v1931 = vunpack.c.l.b16 %v1764
      %v1932 = vunpack.c.l.b16 %v1765
      %v1933 = vunpack.c.l.b16 %v1766
      %v1934 = vunpack.c.l.b16 %v1767
      %v1935 = vunpack.c.l.b16 %v1768
      %v1936 = vunpack.c.l.b16 %v1769
      %v1937 = vunpack.c.l.b16 %v1770
      %v1938 = vunpack.c.l.b16 %v1771
      %v1939 = vunpack.c.l.b16 %v1772
      %v1940 = vunpack.c.l.b16 %v1773
      %v1941 = vunpack.c.l.b16 %v1774
      %v1942 = vunpack.c.l.b16 %v1775
      %v1943 = vunpack.c.l.b16 %v1776
      %v1944 = vunpack.c.l.b16 %v1777
      %v1945 = vunpack.c.l.b16 %v1778
      %v1946 = vunpack.c.l.b16 %v1779
      %v1947 = vunpack.c.l.b16 %v1780
      %v1948 = vunpack.c.l.b16 %v1781
      %v1949 = vunpack.c.l.b16 %v1782
      %v1950 = vunpack.c.l.b16 %v1783
      %v1951 = vunpack.c.l.b16 %v1784
      %v1952 = vunpack.c.l.b16 %v1785
      %v1953 = vunpack.c.l.b16 %v1786
      %v1954 = vunpack.c.l.b16 %v1787
      %v1955 = vunpack.c.l.b16 %v1788
      %v1956 = vunpack.c.l.b16 %v1789
      %v1957 = vunpack.c.l.b16 %v1790
      %v1958 = vunpack.c.l.b16 %v1791
      %v1959 = vunpack.c.l.b16 %v1792
      %v1960 = vunpack.c.l.b16 %v1793
      %v1961 = vunpack.c.l.b16 %v1794
      %v1962 = vunpack.c.l.b16 %v1795
      %v1963 = vpack.c.b16 %v1884, %v1883
      %v1964 = vpack.c.b16 %v1886, %v1885
      %v1965 = vpack.c.b16 %v1888, %v1887
      %v1966 = vpack.c.b16 %v1890, %v1889
      %v1967 = vpack.c.b16 %v1892, %v1891
      %v1968 = vpack.c.b16 %v1894, %v1893
      %v1969 = vpack.c.b16 %v1896, %v1895
      %v1970 = vpack.c.b16 %v1898, %v1897
      %v1971 = vpack.c.b16 %v1900, %v1899
      %v1972 = vpack.c.b16 %v1902, %v1901
      %v1973 = vpack.c.b16 %v1904, %v1903
      %v1974 = vpack.c.b16 %v1906, %v1905
      %v1975 = vpack.c.b16 %v1908, %v1907
      %v1976 = vpack.c.b16 %v1910, %v1909
      %v1977 = vpack.c.b16 %v1912, %v1911
      %v1978 = vpack.c.b16 %v1914, %v1913
      %v1979 = vpack.c.b16 %v1916, %v1915
      %v1980 = vpack.c.b16 %v1918, %v1917
      %v1981 = vpack.c.b16 %v1920, %v1919
      %v1982 = vpack.c.b16 %v1922, %v1921
      %v1983 = vpack.c.b16 %v1924, %v1923
      %v1984 = vpack.c.b16 %v1926, %v1925
      %v1985 = vpack.c.b16 %v1928, %v1927
      %v1986 = vpack.c.b16 %v1930, %v1929
      %v1987 = vpack.c.b16 %v1932, %v1931
      %v1988 = vpack.c.b16 %v1934, %v1933
      %v1989 = vpack.c.b16 %v1936, %v1935
      %v1990 = vpack.c.b16 %v1938, %v1937
      %v1991 = vpack.c.b16 %v1940, %v1939
      %v1992 = vpack.c.b16 %v1942, %v1941
      %v1993 = vpack.c.b16 %v1944, %v1943
      %v1994 = vpack.c.b16 %v1946, %v1945
      %v1995 = vpack.c.b16 %v1948, %v1947
      %v1996 = vpack.c.b16 %v1950, %v1949
      %v1997 = vpack.c.b16 %v1952, %v1951
      %v1998 = vpack.c.b16 %v1954, %v1953
      %v1999 = vpack.c.b16 %v1956, %v1955
      %v2000 = vpack.c.b16 %v1958, %v1957
      %v2001 = vpack.c.b16 %v1960, %v1959
      %v2002 = vpack.c.b16 %v1962, %v1961
      %2043 = vmatprep.subr.bf16.mxu0 0
      %2044 = vmatpush1.bf16.msra.mxu0 %v1970
      %2045 = vmatprep.subr.bf16.mxu0 0
      %2046 = vmatpush1.bf16.msra.mxu0 %v1969
      %2047 = vmatprep.subr.bf16.mxu0 0
      %2048 = vmatpush1.bf16.msra.mxu0 %v1968
      %2049 = vmatprep.subr.bf16.mxu0 0
      %2050 = vmatpush1.bf16.msra.mxu0 %v1967
      %2051 = vmatprep.subr.bf16.mxu0 0
      %2052 = vmatpush1.bf16.msra.mxu0 %v1966
      %2053 = vmatprep.subr.bf16.mxu0 0
      %2054 = vmatpush1.bf16.msra.mxu0 %v1965
      %2055 = vmatprep.subr.bf16.mxu0 0
      %2056 = vmatpush1.bf16.msra.mxu0 %v1964
      %2057 = vmatprep.subr.bf16.mxu0 0
      %2058 = vmatpush1.bf16.msra.mxu0 %v1963
      %2059 = vmatprep.subr.bf16.mxu0 0
      %2060 = vmatpush2.bf16.msra.mxu0 %v1978
      %2061 = vmatprep.subr.bf16.mxu0 0
      %2062 = vmatpush2.bf16.msra.mxu0 %v1977
      %2063 = vmatprep.subr.bf16.mxu0 0
      %2064 = vmatpush2.bf16.msra.mxu0 %v1976
      %2065 = vmatprep.subr.bf16.mxu0 0
      %2066 = vmatpush2.bf16.msra.mxu0 %v1975
      %2067 = vmatprep.subr.bf16.mxu0 0
      %2068 = vmatpush2.bf16.msra.mxu0 %v1974
      %2069 = vmatprep.subr.bf16.mxu0 0
      %2070 = vmatpush2.bf16.msra.mxu0 %v1973
      %2071 = vmatprep.subr.bf16.mxu0 0
      %2072 = vmatpush2.bf16.msra.mxu0 %v1972
      %2073 = vmatprep.subr.bf16.mxu0 0
      %2074 = vmatpush2.bf16.msra.mxu0 %v1971
      %2075 = vmatprep.mubr.bf16.mxu0 %v1712
      %2076 = vmatmul.mubr.bf16.gmra.mxu0 %v1711
      %v2077 = vpop.f32.mrf.mxu0
      %v2078 = vadd.f32 %v1801, %v2077
      %v2079 = vpop.f32.mrf.mxu0
      %v2080 = vpop.f32.mrf.mxu0
      %v2081 = vpop.f32.mrf.mxu0
      %2082 = vdwg.mxu0
      %2083 = vmatprep.subr.bf16.mxu0 0
      %2084 = vmatpush1.bf16.msra.mxu0 %v1986
      %2085 = vmatprep.subr.bf16.mxu0 0
      %2086 = vmatpush1.bf16.msra.mxu0 %v1985
      %2087 = vmatprep.subr.bf16.mxu0 0
      %2088 = vmatpush1.bf16.msra.mxu0 %v1984
      %2089 = vmatprep.subr.bf16.mxu0 0
      %2090 = vmatpush1.bf16.msra.mxu0 %v1983
      %2091 = vmatprep.subr.bf16.mxu0 0
      %2092 = vmatpush1.bf16.msra.mxu0 %v1982
      %2093 = vmatprep.subr.bf16.mxu0 0
      %2094 = vmatpush1.bf16.msra.mxu0 %v1981
      %2095 = vmatprep.subr.bf16.mxu0 0
      %2096 = vmatpush1.bf16.msra.mxu0 %v1980
      %2097 = vmatprep.subr.bf16.mxu0 0
      %2098 = vmatpush1.bf16.msra.mxu0 %v1979
      %2099 = vmatprep.subr.bf16.mxu0 0
      %2100 = vmatpush2.bf16.msra.mxu0 %v1994
      %2101 = vmatprep.subr.bf16.mxu0 0
      %2102 = vmatpush2.bf16.msra.mxu0 %v1993
      %2103 = vmatprep.subr.bf16.mxu0 0
      %2104 = vmatpush2.bf16.msra.mxu0 %v1992
      %2105 = vmatprep.subr.bf16.mxu0 0
      %2106 = vmatpush2.bf16.msra.mxu0 %v1991
      %2107 = vmatprep.subr.bf16.mxu0 0
      %2108 = vmatpush2.bf16.msra.mxu0 %v1990
      %2109 = vmatprep.subr.bf16.mxu0 0
      %2110 = vmatpush2.bf16.msra.mxu0 %v1989
      %2111 = vmatprep.subr.bf16.mxu0 0
      %2112 = vmatpush2.bf16.msra.mxu0 %v1988
      %2113 = vmatprep.subr.bf16.mxu0 0
      %2114 = vmatpush2.bf16.msra.mxu0 %v1987
      %2115 = vmatprep.mubr.bf16.mxu0 %v1714
      %2116 = vmatmul.mubr.bf16.gmra.mxu0 %v1713
      %v2117 = vpop.f32.mrf.mxu0
      %v2118 = vadd.f32 %v2078, %v2117
      %v2119 = vpop.f32.mrf.mxu0
      %v2120 = vpop.f32.mrf.mxu0
      %v2121 = vpop.f32.mrf.mxu0
      %2122 = vdwg.mxu0
      %2123 = vmatprep.subr.bf16.mxu0 0
      %2124 = vmatpush1.bf16.msra.mxu0 %v2002
      %2125 = vmatprep.subr.bf16.mxu0 0
      %2126 = vmatpush1.bf16.msra.mxu0 %v2001
      %2127 = vmatprep.subr.bf16.mxu0 0
      %2128 = vmatpush1.bf16.msra.mxu0 %v2000
      %2129 = vmatprep.subr.bf16.mxu0 0
      %2130 = vmatpush1.bf16.msra.mxu0 %v1999
      %2131 = vmatprep.subr.bf16.mxu0 0
      %2132 = vmatpush1.bf16.msra.mxu0 %v1998
      %2133 = vmatprep.subr.bf16.mxu0 0
      %2134 = vmatpush1.bf16.msra.mxu0 %v1997
      %2135 = vmatprep.subr.bf16.mxu0 0
      %2136 = vmatpush1.bf16.msra.mxu0 %v1996
      %2137 = vmatprep.subr.bf16.mxu0 0
      %2138 = vmatpush1.bf16.msra.mxu0 %v1995
      %2139 = vmatprep.subr.bf16.mxu0 0
      %2140 = vmatpush2.bf16.msra.mxu0 0
      %2141 = vmatprep.subr.bf16.mxu0 0
      %2142 = vmatpush2.bf16.msra.mxu0 0
      %2143 = vmatprep.subr.bf16.mxu0 0
      %2144 = vmatpush2.bf16.msra.mxu0 0
      %2145 = vmatprep.subr.bf16.mxu0 0
      %2146 = vmatpush2.bf16.msra.mxu0 0
      %2147 = vmatprep.subr.bf16.mxu0 0
      %2148 = vmatpush2.bf16.msra.mxu0 0
      %2149 = vmatprep.subr.bf16.mxu0 0
      %2150 = vmatpush2.bf16.msra.mxu0 0
      %2151 = vmatprep.subr.bf16.mxu0 0
      %2152 = vmatpush2.bf16.msra.mxu0 0
      %2153 = vmatprep.subr.bf16.mxu0 0
      %2154 = vmatpush2.bf16.msra.mxu0 0
      %2155 = vmatprep.mubr.bf16.mxu0 0
      %2156 = vmatmul.mubr.bf16.gmra.mxu0 %v1715
      %v2157 = vpop.f32.mrf.mxu0
      %v2158 = vadd.f32 %v2118, %v2157
      %v2159 = vpop.f32.mrf.mxu0
      %v2160 = vpop.f32.mrf.mxu0
      %v2161 = vpop.f32.mrf.mxu0
      %2162 = vdwg.mxu0
      %v2163 = vmax.f32 %v2158, 0.0
      %v2164 = vpack.c.bf16 %v2163, %v2163
      %v2165 = vld [vmem:[%s9] sm:$0xf]
      %v2166 = vld [vmem:[%s9 + $0x4] sm:$0xf]
      %v2167 = vld [vmem:[%s9 + $0x8] sm:$0xf]
      %v2168 = vld [vmem:[%s9 + $0xc] sm:$0xf]
      %v2169 = vld [vmem:[%s9 + $0x10] sm:$0xf]
      %v2170 = vld [vmem:[%s9 + $0x14] sm:$0xf]
      %v2171 = vld [vmem:[%s9 + $0x18] sm:$0xf]
      %v2172 = vld [vmem:[%s9 + $0x1c] sm:$0xf]
      %v2173 = vld [vmem:[%s9 + $0x20] sm:$0xf]
      %v2174 = vld [vmem:[%s9 + $0x24] sm:$0xf]
      %v2175 = vld [vmem:[%s9 + $0x28] sm:$0xf]
      %v2176 = vld [vmem:[%s9 + $0x2c] sm:$0xf]
      %v2177 = vld [vmem:[%s9 + $0x30] sm:$0xf]
      %v2178 = vld [vmem:[%s9 + $0x34] sm:$0xf]
      %v2179 = vld [vmem:[%s9 + $0x38] sm:$0xf]
      %v2180 = vld [vmem:[%s9 + $0x3c] sm:$0xf]
      %v2181 = vld [vmem:[%s10] sm:$0x1]
      %v2183 = vlaneseq
      %v2184 = vshrl.u32 %v2183, 7
      %v2185 = vsub.s32 0, %v2184
      %v2186 = vrot.slane %v2181, %v2185
      %v2204 = vunpack.c.l.b16 %v2165
      %v2205 = vunpack.c.l.b16 %v2166
      %v2206 = vunpack.c.l.b16 %v2167
      %v2207 = vunpack.c.l.b16 %v2168
      %v2208 = vunpack.c.l.b16 %v2169
      %v2209 = vunpack.c.l.b16 %v2170
      %v2210 = vunpack.c.l.b16 %v2171
      %v2211 = vunpack.c.l.b16 %v2172
      %v2212 = vunpack.c.l.b16 %v2173
      %v2213 = vunpack.c.l.b16 %v2174
      %v2214 = vunpack.c.l.b16 %v2175
      %v2215 = vunpack.c.l.b16 %v2176
      %v2216 = vunpack.c.l.b16 %v2177
      %v2217 = vunpack.c.l.b16 %v2178
      %v2218 = vunpack.c.l.b16 %v2179
      %v2219 = vunpack.c.l.b16 %v2180
      %v2220 = vpack.c.b16 %v2205, %v2204
      %v2221 = vpack.c.b16 %v2207, %v2206
      %v2222 = vpack.c.b16 %v2209, %v2208
      %v2223 = vpack.c.b16 %v2211, %v2210
      %v2224 = vpack.c.b16 %v2213, %v2212
      %v2225 = vpack.c.b16 %v2215, %v2214
      %v2226 = vpack.c.b16 %v2217, %v2216
      %v2227 = vpack.c.b16 %v2219, %v2218
      %2236 = vmatprep.subr.bf16.mxu0 0
      %2237 = vmatpush1.bf16.msra.mxu0 %v2227
      %2238 = vmatprep.subr.bf16.mxu0 0
      %2239 = vmatpush1.bf16.msra.mxu0 %v2226
      %2240 = vmatprep.subr.bf16.mxu0 0
      %2241 = vmatpush1.bf16.msra.mxu0 %v2225
      %2242 = vmatprep.subr.bf16.mxu0 0
      %2243 = vmatpush1.bf16.msra.mxu0 %v2224
      %2244 = vmatprep.subr.bf16.mxu0 0
      %2245 = vmatpush1.bf16.msra.mxu0 %v2223
      %2246 = vmatprep.subr.bf16.mxu0 0
      %2247 = vmatpush1.bf16.msra.mxu0 %v2222
      %2248 = vmatprep.subr.bf16.mxu0 0
      %2249 = vmatpush1.bf16.msra.mxu0 %v2221
      %2250 = vmatprep.subr.bf16.mxu0 0
      %2251 = vmatpush1.bf16.msra.mxu0 %v2220
      %2252 = vmatprep.subr.bf16.mxu0 0
      %2253 = vmatpush2.bf16.msra.mxu0 0
      %2254 = vmatprep.subr.bf16.mxu0 0
      %2255 = vmatpush2.bf16.msra.mxu0 0
      %2256 = vmatprep.subr.bf16.mxu0 0
      %2257 = vmatpush2.bf16.msra.mxu0 0
      %2258 = vmatprep.subr.bf16.mxu0 0
      %2259 = vmatpush2.bf16.msra.mxu0 0
      %2260 = vmatprep.subr.bf16.mxu0 0
      %2261 = vmatpush2.bf16.msra.mxu0 0
      %2262 = vmatprep.subr.bf16.mxu0 0
      %2263 = vmatpush2.bf16.msra.mxu0 0
      %2264 = vmatprep.subr.bf16.mxu0 0
      %2265 = vmatpush2.bf16.msra.mxu0 0
      %2266 = vmatprep.subr.bf16.mxu0 0
      %2267 = vmatpush2.bf16.msra.mxu0 0
      %2268 = vmatprep.mubr.bf16.mxu0 0
      %2269 = vmatmul.mubr.bf16.gmra.mxu0 %v2164
      %v2270 = vpop.f32.mrf.mxu0
      %v2271 = vadd.f32 %v2186, %v2270
      %v2272 = vpop.f32.mrf.mxu0
      %v2273 = vpop.f32.mrf.mxu0
      %v2274 = vpop.f32.mrf.mxu0
      %2275 = vdwg.mxu0
      %v2276 = vmax.f32 %v2271, 0.0
      %v2277 = vpack.c.bf16 %v2276, %v2276
      %v2278 = vld [vmem:[%s11] sm:$0xf]
      %v2279 = vld [vmem:[%s11 + $0x4] sm:$0xf]
      %v2280 = vld [vmem:[%s11 + $0x8] sm:$0xf]
      %v2281 = vld [vmem:[%s11 + $0xc] sm:$0xf]
      %v2282 = vld [vmem:[%s11 + $0x10] sm:$0xf]
      %v2283 = vld [vmem:[%s11 + $0x14] sm:$0xf]
      %v2284 = vld [vmem:[%s11 + $0x18] sm:$0xf]
      %v2285 = vld [vmem:[%s11 + $0x1c] sm:$0xf]
      %v2286 = vld [vmem:[%s11 + $0x20] sm:$0xf]
      %v2287 = vld [vmem:[%s11 + $0x24] sm:$0xf]
      %v2288 = vld [vmem:[%s11 + $0x28] sm:$0xf]
      %v2289 = vld [vmem:[%s11 + $0x2c] sm:$0xf]
      %v2290 = vld [vmem:[%s11 + $0x30] sm:$0xf]
      %v2291 = vld [vmem:[%s11 + $0x34] sm:$0xf]
      %v2292 = vld [vmem:[%s11 + $0x38] sm:$0xf]
      %v2293 = vld [vmem:[%s11 + $0x3c] sm:$0xf]
      %v2294 = vld [vmem:[%s12] sm:$0x1]
      %v2296 = vlaneseq
      %v2297 = vshrl.u32 %v2296, 7
      %v2298 = vsub.s32 0, %v2297
      %v2299 = vrot.slane %v2294, %v2298
      %v2317 = vunpack.c.l.b16 %v2278
      %v2318 = vunpack.c.l.b16 %v2279
      %v2319 = vunpack.c.l.b16 %v2280
      %v2320 = vunpack.c.l.b16 %v2281
      %v2321 = vunpack.c.l.b16 %v2282
      %v2322 = vunpack.c.l.b16 %v2283
      %v2323 = vunpack.c.l.b16 %v2284
      %v2324 = vunpack.c.l.b16 %v2285
      %v2325 = vunpack.c.l.b16 %v2286
      %v2326 = vunpack.c.l.b16 %v2287
      %v2327 = vunpack.c.l.b16 %v2288
      %v2328 = vunpack.c.l.b16 %v2289
      %v2329 = vunpack.c.l.b16 %v2290
      %v2330 = vunpack.c.l.b16 %v2291
      %v2331 = vunpack.c.l.b16 %v2292
      %v2332 = vunpack.c.l.b16 %v2293
      %v2333 = vpack.c.b16 %v2318, %v2317
      %v2334 = vpack.c.b16 %v2320, %v2319
      %v2335 = vpack.c.b16 %v2322, %v2321
      %v2336 = vpack.c.b16 %v2324, %v2323
      %v2337 = vpack.c.b16 %v2326, %v2325
      %v2338 = vpack.c.b16 %v2328, %v2327
      %v2339 = vpack.c.b16 %v2330, %v2329
      %v2340 = vpack.c.b16 %v2332, %v2331
      %2349 = vmatprep.subr.bf16.mxu0 0
      %2350 = vmatpush1.bf16.msra.mxu0 %v2340
      %2351 = vmatprep.subr.bf16.mxu0 0
      %2352 = vmatpush1.bf16.msra.mxu0 %v2339
      %2353 = vmatprep.subr.bf16.mxu0 0
      %2354 = vmatpush1.bf16.msra.mxu0 %v2338
      %2355 = vmatprep.subr.bf16.mxu0 0
      %2356 = vmatpush1.bf16.msra.mxu0 %v2337
      %2357 = vmatprep.subr.bf16.mxu0 0
      %2358 = vmatpush1.bf16.msra.mxu0 %v2336
      %2359 = vmatprep.subr.bf16.mxu0 0
      %2360 = vmatpush1.bf16.msra.mxu0 %v2335
      %2361 = vmatprep.subr.bf16.mxu0 0
      %2362 = vmatpush1.bf16.msra.mxu0 %v2334
      %2363 = vmatprep.subr.bf16.mxu0 0
      %2364 = vmatpush1.bf16.msra.mxu0 %v2333
      %2365 = vmatprep.subr.bf16.mxu0 0
      %2366 = vmatpush2.bf16.msra.mxu0 0
      %2367 = vmatprep.subr.bf16.mxu0 0
      %2368 = vmatpush2.bf16.msra.mxu0 0
      %2369 = vmatprep.subr.bf16.mxu0 0
      %2370 = vmatpush2.bf16.msra.mxu0 0
      %2371 = vmatprep.subr.bf16.mxu0 0
      %2372 = vmatpush2.bf16.msra.mxu0 0
      %2373 = vmatprep.subr.bf16.mxu0 0
      %2374 = vmatpush2.bf16.msra.mxu0 0
      %2375 = vmatprep.subr.bf16.mxu0 0
      %2376 = vmatpush2.bf16.msra.mxu0 0
      %2377 = vmatprep.subr.bf16.mxu0 0
      %2378 = vmatpush2.bf16.msra.mxu0 0
      %2379 = vmatprep.subr.bf16.mxu0 0
      %2380 = vmatpush2.bf16.msra.mxu0 0
      %2381 = vmatprep.mubr.bf16.mxu0 0
      %2382 = vmatmul.mubr.bf16.gmra.mxu0 %v2277
      %v2383 = vpop.f32.mrf.mxu0
      %v2384 = vadd.f32 %v2299, %v2383
      %v2385 = vpop.f32.mrf.mxu0
      %v2386 = vpop.f32.mrf.mxu0
      %v2387 = vpop.f32.mrf.mxu0
      %2388 = vdwg.mxu0
      %2389 = vst [vmem:[%s443] sm:$0xff] %v2384
      %p2390 = scmp.lt.s32.totalorder %s24, 1
      %s2391 = scalar_select %p2390, %s24, 1
      %s2392 = smul.addr %s2391, 8
      %s2393 = scalar_lea.vmem %s13, %s2392
      // Predicated region
      $region73: #{lenet_forward.1} parent=71 // pred_check
        %p2394 = pneg %p320
      $region74: #{lenet_forward.1} parent=71 // pred_check_branch
        %2396 = sbr.rel (%p2394) target = $region76
      $region75: #{lenet_forward.1} parent=71 // pred_region
        _
      $region76: #{lenet_forward.1} parent=71 // pred_fallthru
        _
    $region72: #{lenet_forward.1} parent=5 // pred_fallthru
      _
    %p2397 = scmp.le.s32.totalorder 2, %s19
    // Predicated region
    $region77: #{lenet_forward.1} parent=5 // pred_check
      %p2398 = pneg %p2397
    $region78: #{lenet_forward.1} parent=5 // pred_check_branch
      %2400 = sbr.rel (%p2398) target = $region80
    $region79: #{lenet_forward.1} parent=5 // pred_region
      %s2401 = ssub.s32 %s19, 2
      // Predicated region
      $region81: #{lenet_forward.1} parent=79 // pred_check
        %p2402 = pneg %p326
      $region82: #{lenet_forward.1} parent=79 // pred_check_branch
        %2404 = sbr.rel (%p2402) target = $region84
      $region83: #{lenet_forward.1} parent=79 // pred_region
        %p2405 = scmp.lt.s32.totalorder %s25, 1
        %s2406 = scalar_select %p2405, %s25, 1
        %s2407 = smul.addr %s2406, 8
        %s2408 = scalar_lea.vmem %s13, %s2407
      $region84: #{lenet_forward.1} parent=79 // pred_fallthru
        _
    $region80: #{lenet_forward.1} parent=5 // pred_fallthru
      _
  $region6: #{lenet_forward.1} parent=0 // loop_footer
    %s23 = sadd.s32 1, %s19
  $region7: #{lenet_forward.1} parent=0 // loop_footer_branch
    %18 = sbr.rel target = $region3
  $region8: #{lenet_forward.1} parent=0 // loop_exit
    _

</llo_original>
